<compile_context>
chip_gen: v7x
topology: tpu7x:2x2x1
jax: 0.10.0
libtpu: 0.0.40
codegen_flags: <defaults>
</compile_context>

<pallas_src>
import functools

import jax
import jax.numpy as jnp
import numpy as np
from jax import lax
from jax.experimental import pallas as pl
from jax.experimental.pallas import tpu as pltpu


def _round_up(x, m):
    return (x + m - 1) // m * m


def _vmem_budget_bytes():
    """Generation-aware VMEM budget: fits v7x's 64 MiB, grows on v5e/v6e (128 MiB)."""
    cap = 64 * 1024 * 1024
    try:
        cap = int(getattr(pltpu.get_tpu_info(), "vmem_capacity_bytes", cap))
    except Exception:
        pass
    return max(24 * 1024 * 1024, min(int(cap * 0.6), 96 * 1024 * 1024))


def _pick_row_tile(out_h, out_w, row_cap):
    """Largest row tile <= row_cap dividing out_h with row_tile*out_w % 8 == 0.

    Falls back to the full image height (block == full array dim, always legal)
    so we never emit a block that violates the (8, 128) tiling constraint or
    degrades to masked partial stores.
    """
    for rt in range(min(out_h, max(1, int(row_cap))), 0, -1):
        if out_h % rt == 0 and (rt * out_w) % 8 == 0:
            return rt
    return out_h


def _pick_spatial_tile(m_img, cap):
    """Largest multiple-of-128 divisor of m_img that is <= cap (else full m_img)."""
    hi = min(m_img, max(128, int(cap)))
    hi -= hi % 128
    for t in range(hi, 0, -128):
        if m_img % t == 0:
            return t
    return m_img


def _conv_stats_kernel(x_ref, w_ref, y_ref, stats_ref, *,
                       row_tile, out_w, ksize, stride, dilation, cin):
    # x_ref:     (Hp, Wp, Cin)          padded NHWC image of one batch element, bf16
    # w_ref:     (ksize*ksize, Cin, Cp) per-tap weights, bf16
    # y_ref:     (row_tile*out_w, Cp)   conv rows for this tile, bf16
    # stats_ref: (2, Cp)                per-tile [sum, sum_of_squares] of the f32 acc
    t = pl.program_id(1)
    row0 = pl.multiple_of(t * (row_tile * stride), row_tile * stride)
    m_rows = row_tile * out_w

    # Per-tap bf16 matmuls accumulated in f32: no (m, k*k*Cin) patch, no concat.
    acc = None
    for idx in range(ksize * ksize):
        kh, kw = divmod(idx, ksize)
        h0 = row0 + kh * dilation
        w0 = kw * dilation
        if stride == 1:
            tap = x_ref[pl.ds(h0, row_tile), pl.ds(w0, out_w), :]
        else:
            # Strided ref reads: no dense-window load + in-VMEM subsample.
            tap = x_ref[pl.ds(h0, row_tile, stride=stride),
                        pl.ds(w0, out_w, stride=stride), :]
        part = jnp.dot(tap.reshape(m_rows, cin), w_ref[idx],
                       preferred_element_type=jnp.float32)
        acc = part if acc is None else acc + part

    # NOTE: Conv2d bias intentionally not added -- train-mode BatchNorm's
    # batch-mean subtraction cancels it exactly (and the smaller mean also
    # helps the E[x^2] - E[x]^2 variance formula).
    y_ref[...] = acc.astype(y_ref.dtype)           # bf16 intermediate store

    # BN partials via XLU sublane reductions (not MXU ones-matmuls), from the
    # f32 accumulator; one fused 2-row store.
    s1 = jnp.sum(acc, axis=0, keepdims=True)
    s2 = jnp.sum(acc * acc, axis=0, keepdims=True)
    stats_ref[...] = jnp.concatenate([s1, s2], axis=0)


def _bn_act_transpose_kernel(y_ref, scale_ref, shift_ref, o_ref, *, neg_slope, cout):
    # y_ref: (m_tile, Cp) bf16 conv rows.  o_ref: (Cout, m_tile) f32 channel-major.
    z = y_ref[...].astype(jnp.float32) * scale_ref[...] + shift_ref[...]
    z = jnp.where(z > 0, z, neg_slope * z)
    # In-kernel 2-D transpose (XLU slot, free under a memory-bound pass) so the
    # final NCHW layout -- real Cout channels only -- is written directly.
    o_ref[...] = jnp.transpose(z)[:cout, :]


def conv_bn_leakyrelu(x_nchw, weight_oihw, bias, gamma, beta, *,
                      ksize, padding=0, stride=1, dilation=1,
                      eps=1e-5, neg_slope=0.1,
                      conv_row_cap=None, norm_tile_cap=None):
    """Forward of Conv_BN_LeakyReLU (train-mode batch stats). NCHW in / NCHW out.

    `bias` is accepted for nn.Conv2d API parity but not applied: with train-mode
    BatchNorm the batch-mean subtraction cancels it exactly.
    """
    del bias
    N, Cin, H, W = x_nchw.shape
    Cout = weight_oihw.shape[0]
    budget = _vmem_budget_bytes()

    # ---- host-side layout prep (shapes only) ----------------------------------
    # NCHW -> NHWC, bf16 for the MXU; zero halo pad in H/W.
    # TODO(synk): fold the halo pad into the kernel's DMA instead of jnp.pad.
    x = jnp.transpose(x_nchw, (0, 2, 3, 1)).astype(jnp.bfloat16)
    x = jnp.pad(x, ((0, 0), (padding, padding), (padding, padding), (0, 0)))
    Hp, Wp = x.shape[1], x.shape[2]
    out_h = (Hp - dilation * (ksize - 1) - 1) // stride + 1
    out_w = (Wp - dilation * (ksize - 1) - 1) // stride + 1
    m_img = out_h * out_w
    m_total = N * m_img

    # Lane-dense channel axis (multiple of 128): dense MXU output, unmasked stores.
    Cp = _round_up(Cout, 128)
    w_taps = jnp.transpose(weight_oihw, (2, 3, 1, 0)).astype(jnp.bfloat16)  # (KH,KW,Cin,Cout)
    w_taps = jnp.pad(w_taps.reshape(ksize * ksize, Cin, Cout),
                     ((0, 0), (0, 0), (0, Cp - Cout)))
    gamma_p = jnp.pad(gamma.astype(jnp.float32), (0, Cp - Cout))
    beta_p = jnp.pad(beta.astype(jnp.float32), (0, Cp - Cout))

    # ---- phase 1: tiled conv (bf16 out) + per-tile sum / sumsq -----------------
    if conv_row_cap is None:
        img_bytes = Hp * Wp * Cin * 2
        w_bytes = ksize * ksize * Cin * Cp * 2
        per_row = out_w * (Cp * (2 * 2 + 4) + Cin * 2 * 2)  # 2x bf16 y + f32 acc + taps
        fixed = 2 * img_bytes + 2 * w_bytes + (2 << 20)
        conv_row_cap = max(8, (budget - fixed) // max(per_row, 1))
    row_tile = _pick_row_tile(out_h, out_w, conv_row_cap)
    n_h_tiles = out_h // row_tile
    m_tile = row_tile * out_w

    conv_kernel = functools.partial(
        _conv_stats_kernel, row_tile=row_tile, out_w=out_w,
        ksize=ksize, stride=stride, dilation=dilation, cin=Cin)

    # TODO(synk): for very large feature maps on v7x (64 MiB VMEM), halo-tile the
    # input over H (or manually double-buffer row windows from HBM) instead of
    # keeping the whole padded image VMEM-resident per batch element.
    y_conv, stats = pl.pallas_call(
        conv_kernel,
        grid=(N, n_h_tiles),
        in_specs=[
            # Whole padded image of batch element n stays resident across its row
            # tiles (block index constant in t -> no re-DMA).
            pl.BlockSpec((None, Hp, Wp, Cin), lambda n, t: (n, 0, 0, 0)),
            pl.BlockSpec((ksize * ksize, Cin, Cp), lambda n, t: (0, 0, 0)),
        ],
        out_specs=(
            pl.BlockSpec((None, m_tile, Cp), lambda n, t: (n, t, 0)),
            pl.BlockSpec((None, None, 2, Cp), lambda n, t: (n, t, 0, 0)),
        ),
        out_shape=(
            jax.ShapeDtypeStruct((N, m_img, Cp), jnp.bfloat16),
            jax.ShapeDtypeStruct((N, n_h_tiles, 2, Cp), jnp.float32),
        ),
        compiler_params=pltpu.CompilerParams(
            dimension_semantics=("parallel", "arbitrary"),
            vmem_limit_bytes=budget),
    )(x, w_taps)

    # ---- batch-norm statistics (tiny per-channel math) -------------------------
    # TODO(synk): switch to per-tile-centered / Welford partials if |mean| >> std.
    sums = jnp.sum(stats, axis=(0, 1))                       # (2, Cp)
    mean = sums[0] / m_total
    var = jnp.maximum(sums[1] / m_total - mean * mean, 0.0)  # biased variance (train BN)
    inv = lax.rsqrt(var + eps)
    scale = (gamma_p * inv).reshape(1, Cp)
    shift = (beta_p - mean * gamma_p * inv).reshape(1, Cp)

    # ---- phase 2: normalize + LeakyReLU, write channel-major (NCHW) directly ---
    if norm_tile_cap is None:
        per_elem = Cp * (2 * 2 + 4) + Cout * 4 * 2           # 2x bf16 in + f32 compute + 2x f32 out
        norm_tile_cap = max(128, (budget - (1 << 20)) // max(per_elem, 1))
    m_tile2 = _pick_spatial_tile(m_img, norm_tile_cap)

    bn_kernel = functools.partial(_bn_act_transpose_kernel,
                                  neg_slope=neg_slope, cout=Cout)
    out_flat = pl.pallas_call(
        bn_kernel,
        grid=(N, m_img // m_tile2),
        in_specs=[
            pl.BlockSpec((None, m_tile2, Cp), lambda n, j: (n, j, 0)),
            pl.BlockSpec((1, Cp), lambda n, j: (0, 0)),
            pl.BlockSpec((1, Cp), lambda n, j: (0, 0)),
        ],
        out_specs=pl.BlockSpec((None, Cout, m_tile2), lambda n, j: (n, 0, j)),
        out_shape=jax.ShapeDtypeStruct((N, Cout, m_img), jnp.float32),
        compiler_params=pltpu.CompilerParams(
            dimension_semantics=("parallel", "parallel"),
            vmem_limit_bytes=budget),
    )(y_conv, scale, shift)

    # Free reshape (contiguous split of the last axis), no transpose needed.
    return out_flat.reshape(N, Cout, out_h, out_w)


def _reference(x_nchw, weight_oihw, bias, gamma, beta, *,
               ksize, padding, stride, dilation, eps=1e-5, neg_slope=0.1):
    # Plain f32 reference of the PyTorch module in .train() mode.  Inputs/weights
    # are pre-rounded to bf16 (exactly what the kernel feeds the MXU); the
    # remaining kernel deviation is the bf16 storage of the conv intermediate
    # (<= 1 bf16 ulp before rescale), covered by the test tolerance below.
    xr = x_nchw.astype(jnp.bfloat16).astype(jnp.float32)
    wr = weight_oihw.astype(jnp.bfloat16).astype(jnp.float32)
    conv = lax.conv_general_dilated(
        xr, wr, window_strides=(stride, stride),
        padding=[(padding, padding), (padding, padding)],
        rhs_dilation=(dilation, dilation),
        dimension_numbers=("NCHW", "OIHW", "NCHW"),
        precision=lax.Precision.HIGHEST,
    ) + bias.reshape(1, -1, 1, 1)
    mean = jnp.mean(conv, axis=(0, 2, 3), keepdims=True)
    var = jnp.mean((conv - mean) ** 2, axis=(0, 2, 3), keepdims=True)
    y = (conv - mean) * lax.rsqrt(var + eps)
    y = y * gamma.reshape(1, -1, 1, 1) + beta.reshape(1, -1, 1, 1)
    return jnp.where(y > 0, y, neg_slope * y)


if __name__ == "__main__":
    # Small deterministic example: in_channels=4, out_channels=8, ksize=3,
    # padding=1, stride=1, dilation=1, batch=2, spatial=16x16.
    in_channels, out_channels, ksize = 4, 8, 3
    padding, stride, dilation = 1, 1, 1
    N, H, W = 2, 16, 16

    key = jax.random.PRNGKey(0)
    kx, kw, kb, kg, kbe = jax.random.split(key, 5)

    x = jax.random.normal(kx, (N, in_channels, H, W), dtype=jnp.float32)
    weight = 0.1 * jax.random.normal(kw, (out_channels, in_channels, ksize, ksize),
                                     dtype=jnp.float32)   # PyTorch Conv2d weight: OIHW
    bias = 0.1 * jax.random.normal(kb, (out_channels,), dtype=jnp.float32)
    gamma = 1.0 + 0.1 * jax.random.normal(kg, (out_channels,), dtype=jnp.float32)
    beta = 0.1 * jax.random.normal(kbe, (out_channels,), dtype=jnp.float32)

    # Small caps so the toy shapes exercise multi-step grids in both phases.
    out = conv_bn_leakyrelu(x, weight, bias, gamma, beta,
                            ksize=ksize, padding=padding,
                            stride=stride, dilation=dilation,
                            conv_row_cap=8, norm_tile_cap=128)
    out = jax.block_until_ready(out)

    ref = _reference(x, weight, bias, gamma, beta,
                     ksize=ksize, padding=padding, stride=stride, dilation=dilation)
    # Tolerance accounts for the documented bf16 storage of the conv intermediate.
    np.testing.assert_allclose(np.asarray(out), np.asarray(ref), rtol=1e-2, atol=1e-2)

    print("KERNEL_OK")
</pallas_src>

<mosaic_0001>
module attributes {stable_mosaic.version = 11 : i64} {
  func.func @_conv_stats_kernel(%arg0: i32, %arg1: i32, %arg2: memref<1x18x18x4xbf16, #tpu.memory_space<vmem>>, %arg3: memref<9x4x128xbf16, #tpu.memory_space<vmem>>, %arg4: memref<1x128x128xbf16, #tpu.memory_space<vmem>>, %arg5: memref<1x1x2x128xf32, #tpu.memory_space<vmem>>) attributes {dimension_semantics = [#tpu.dimension_semantics<parallel>, #tpu.dimension_semantics<arbitrary>], iteration_bounds = array<i64: 2, 2>, scalar_prefetch = 0 : i64, scratch_operands = 0 : i64, tpu.core_type = #tpu.core_type<tc>, window_params = [{transform_indices = @transform_0, window_bounds = array<i64: 1, 18, 18, 4>}, {pipeline_mode = #tpu.pipeline_mode<synchronous>, transform_indices = @transform_1, window_bounds = array<i64: 9, 4, 128>}, {transform_indices = @transform_2, window_bounds = array<i64: 1, 128, 128>}, {transform_indices = @transform_3, window_bounds = array<i64: 1, 1, 2, 128>}]} {
    %c8_i32 = arith.constant 8 : i32
    %0 = arith.muli %arg1, %c8_i32 : i32
    %1 = tpu.assume_multiple %0, 8 : i32
    %c0_i32 = arith.constant 0 : i32
    %2 = arith.addi %1, %c0_i32 : i32
    %c0 = arith.constant 0 : index
    %3 = arith.index_cast %2 : i32 to index
    %c0_0 = arith.constant 0 : index
    %c0_1 = arith.constant 0 : index
    %4 = vector.load %arg2[%c0, %3, %c0_0, %c0_1] : memref<1x18x18x4xbf16, #tpu.memory_space<vmem>>, vector<1x8x16x4xbf16>
    %5 = vector.shape_cast %4 : vector<1x8x16x4xbf16> to vector<8x16x4xbf16>
    %6 = vector.shape_cast %5 : vector<8x16x4xbf16> to vector<128x4xbf16>
    %c0_2 = arith.constant 0 : index
    %c0_3 = arith.constant 0 : index
    %c0_4 = arith.constant 0 : index
    %7 = vector.load %arg3[%c0_2, %c0_3, %c0_4] : memref<9x4x128xbf16, #tpu.memory_space<vmem>>, vector<1x4x128xbf16>
    %8 = vector.shape_cast %7 : vector<1x4x128xbf16> to vector<4x128xbf16>
    %cst = arith.constant dense<0.000000e+00> : vector<128x128xf32>
    %9 = tpu.matmul %6, %8, %cst {dimension_numbers = #tpu.dot_dimension_numbers<[1], [0], [0], [1], [0, 0, 1, 1], [], []>} : vector<128x4xbf16>, vector<4x128xbf16>, vector<128x128xf32> -> vector<128x128xf32>
    %c0_i32_5 = arith.constant 0 : i32
    %10 = arith.addi %1, %c0_i32_5 : i32
    %c0_6 = arith.constant 0 : index
    %11 = arith.index_cast %10 : i32 to index
    %c1 = arith.constant 1 : index
    %c0_7 = arith.constant 0 : index
    %12 = vector.load %arg2[%c0_6, %11, %c1, %c0_7] : memref<1x18x18x4xbf16, #tpu.memory_space<vmem>>, vector<1x8x16x4xbf16>
    %13 = vector.shape_cast %12 : vector<1x8x16x4xbf16> to vector<8x16x4xbf16>
    %14 = vector.shape_cast %13 : vector<8x16x4xbf16> to vector<128x4xbf16>
    %c1_8 = arith.constant 1 : index
    %c0_9 = arith.constant 0 : index
    %c0_10 = arith.constant 0 : index
    %15 = vector.load %arg3[%c1_8, %c0_9, %c0_10] : memref<9x4x128xbf16, #tpu.memory_space<vmem>>, vector<1x4x128xbf16>
    %16 = vector.shape_cast %15 : vector<1x4x128xbf16> to vector<4x128xbf16>
    %cst_11 = arith.constant dense<0.000000e+00> : vector<128x128xf32>
    %17 = tpu.matmul %14, %16, %cst_11 {dimension_numbers = #tpu.dot_dimension_numbers<[1], [0], [0], [1], [0, 0, 1, 1], [], []>} : vector<128x4xbf16>, vector<4x128xbf16>, vector<128x128xf32> -> vector<128x128xf32>
    %18 = arith.addf %9, %17 : vector<128x128xf32>
    %c0_i32_12 = arith.constant 0 : i32
    %19 = arith.addi %1, %c0_i32_12 : i32
    %c0_13 = arith.constant 0 : index
    %20 = arith.index_cast %19 : i32 to index
    %c2 = arith.constant 2 : index
    %c0_14 = arith.constant 0 : index
    %21 = vector.load %arg2[%c0_13, %20, %c2, %c0_14] : memref<1x18x18x4xbf16, #tpu.memory_space<vmem>>, vector<1x8x16x4xbf16>
    %22 = vector.shape_cast %21 : vector<1x8x16x4xbf16> to vector<8x16x4xbf16>
    %23 = vector.shape_cast %22 : vector<8x16x4xbf16> to vector<128x4xbf16>
    %c2_15 = arith.constant 2 : index
    %c0_16 = arith.constant 0 : index
    %c0_17 = arith.constant 0 : index
    %24 = vector.load %arg3[%c2_15, %c0_16, %c0_17] : memref<9x4x128xbf16, #tpu.memory_space<vmem>>, vector<1x4x128xbf16>
    %25 = vector.shape_cast %24 : vector<1x4x128xbf16> to vector<4x128xbf16>
    %cst_18 = arith.constant dense<0.000000e+00> : vector<128x128xf32>
    %26 = tpu.matmul %23, %25, %cst_18 {dimension_numbers = #tpu.dot_dimension_numbers<[1], [0], [0], [1], [0, 0, 1, 1], [], []>} : vector<128x4xbf16>, vector<4x128xbf16>, vector<128x128xf32> -> vector<128x128xf32>
    %27 = arith.addf %18, %26 : vector<128x128xf32>
    %c1_i32 = arith.constant 1 : i32
    %28 = arith.addi %1, %c1_i32 : i32
    %c0_19 = arith.constant 0 : index
    %29 = arith.index_cast %28 : i32 to index
    %c0_20 = arith.constant 0 : index
    %c0_21 = arith.constant 0 : index
    %30 = vector.load %arg2[%c0_19, %29, %c0_20, %c0_21] : memref<1x18x18x4xbf16, #tpu.memory_space<vmem>>, vector<1x8x16x4xbf16>
    %31 = vector.shape_cast %30 : vector<1x8x16x4xbf16> to vector<8x16x4xbf16>
    %32 = vector.shape_cast %31 : vector<8x16x4xbf16> to vector<128x4xbf16>
    %c3 = arith.constant 3 : index
    %c0_22 = arith.constant 0 : index
    %c0_23 = arith.constant 0 : index
    %33 = vector.load %arg3[%c3, %c0_22, %c0_23] : memref<9x4x128xbf16, #tpu.memory_space<vmem>>, vector<1x4x128xbf16>
    %34 = vector.shape_cast %33 : vector<1x4x128xbf16> to vector<4x128xbf16>
    %cst_24 = arith.constant dense<0.000000e+00> : vector<128x128xf32>
    %35 = tpu.matmul %32, %34, %cst_24 {dimension_numbers = #tpu.dot_dimension_numbers<[1], [0], [0], [1], [0, 0, 1, 1], [], []>} : vector<128x4xbf16>, vector<4x128xbf16>, vector<128x128xf32> -> vector<128x128xf32>
    %36 = arith.addf %27, %35 : vector<128x128xf32>
    %c1_i32_25 = arith.constant 1 : i32
    %37 = arith.addi %1, %c1_i32_25 : i32
    %c0_26 = arith.constant 0 : index
    %38 = arith.index_cast %37 : i32 to index
    %c1_27 = arith.constant 1 : index
    %c0_28 = arith.constant 0 : index
    %39 = vector.load %arg2[%c0_26, %38, %c1_27, %c0_28] : memref<1x18x18x4xbf16, #tpu.memory_space<vmem>>, vector<1x8x16x4xbf16>
    %40 = vector.shape_cast %39 : vector<1x8x16x4xbf16> to vector<8x16x4xbf16>
    %41 = vector.shape_cast %40 : vector<8x16x4xbf16> to vector<128x4xbf16>
    %c4 = arith.constant 4 : index
    %c0_29 = arith.constant 0 : index
    %c0_30 = arith.constant 0 : index
    %42 = vector.load %arg3[%c4, %c0_29, %c0_30] : memref<9x4x128xbf16, #tpu.memory_space<vmem>>, vector<1x4x128xbf16>
    %43 = vector.shape_cast %42 : vector<1x4x128xbf16> to vector<4x128xbf16>
    %cst_31 = arith.constant dense<0.000000e+00> : vector<128x128xf32>
    %44 = tpu.matmul %41, %43, %cst_31 {dimension_numbers = #tpu.dot_dimension_numbers<[1], [0], [0], [1], [0, 0, 1, 1], [], []>} : vector<128x4xbf16>, vector<4x128xbf16>, vector<128x128xf32> -> vector<128x128xf32>
    %45 = arith.addf %36, %44 : vector<128x128xf32>
    %c1_i32_32 = arith.constant 1 : i32
    %46 = arith.addi %1, %c1_i32_32 : i32
    %c0_33 = arith.constant 0 : index
    %47 = arith.index_cast %46 : i32 to index
    %c2_34 = arith.constant 2 : index
    %c0_35 = arith.constant 0 : index
    %48 = vector.load %arg2[%c0_33, %47, %c2_34, %c0_35] : memref<1x18x18x4xbf16, #tpu.memory_space<vmem>>, vector<1x8x16x4xbf16>
    %49 = vector.shape_cast %48 : vector<1x8x16x4xbf16> to vector<8x16x4xbf16>
    %50 = vector.shape_cast %49 : vector<8x16x4xbf16> to vector<128x4xbf16>
    %c5 = arith.constant 5 : index
    %c0_36 = arith.constant 0 : index
    %c0_37 = arith.constant 0 : index
    %51 = vector.load %arg3[%c5, %c0_36, %c0_37] : memref<9x4x128xbf16, #tpu.memory_space<vmem>>, vector<1x4x128xbf16>
    %52 = vector.shape_cast %51 : vector<1x4x128xbf16> to vector<4x128xbf16>
    %cst_38 = arith.constant dense<0.000000e+00> : vector<128x128xf32>
    %53 = tpu.matmul %50, %52, %cst_38 {dimension_numbers = #tpu.dot_dimension_numbers<[1], [0], [0], [1], [0, 0, 1, 1], [], []>} : vector<128x4xbf16>, vector<4x128xbf16>, vector<128x128xf32> -> vector<128x128xf32>
    %54 = arith.addf %45, %53 : vector<128x128xf32>
    %c2_i32 = arith.constant 2 : i32
    %55 = arith.addi %1, %c2_i32 : i32
    %c0_39 = arith.constant 0 : index
    %56 = arith.index_cast %55 : i32 to index
    %c0_40 = arith.constant 0 : index
    %c0_41 = arith.constant 0 : index
    %57 = vector.load %arg2[%c0_39, %56, %c0_40, %c0_41] : memref<1x18x18x4xbf16, #tpu.memory_space<vmem>>, vector<1x8x16x4xbf16>
    %58 = vector.shape_cast %57 : vector<1x8x16x4xbf16> to vector<8x16x4xbf16>
    %59 = vector.shape_cast %58 : vector<8x16x4xbf16> to vector<128x4xbf16>
    %c6 = arith.constant 6 : index
    %c0_42 = arith.constant 0 : index
    %c0_43 = arith.constant 0 : index
    %60 = vector.load %arg3[%c6, %c0_42, %c0_43] : memref<9x4x128xbf16, #tpu.memory_space<vmem>>, vector<1x4x128xbf16>
    %61 = vector.shape_cast %60 : vector<1x4x128xbf16> to vector<4x128xbf16>
    %cst_44 = arith.constant dense<0.000000e+00> : vector<128x128xf32>
    %62 = tpu.matmul %59, %61, %cst_44 {dimension_numbers = #tpu.dot_dimension_numbers<[1], [0], [0], [1], [0, 0, 1, 1], [], []>} : vector<128x4xbf16>, vector<4x128xbf16>, vector<128x128xf32> -> vector<128x128xf32>
    %63 = arith.addf %54, %62 : vector<128x128xf32>
    %c2_i32_45 = arith.constant 2 : i32
    %64 = arith.addi %1, %c2_i32_45 : i32
    %c0_46 = arith.constant 0 : index
    %65 = arith.index_cast %64 : i32 to index
    %c1_47 = arith.constant 1 : index
    %c0_48 = arith.constant 0 : index
    %66 = vector.load %arg2[%c0_46, %65, %c1_47, %c0_48] : memref<1x18x18x4xbf16, #tpu.memory_space<vmem>>, vector<1x8x16x4xbf16>
    %67 = vector.shape_cast %66 : vector<1x8x16x4xbf16> to vector<8x16x4xbf16>
    %68 = vector.shape_cast %67 : vector<8x16x4xbf16> to vector<128x4xbf16>
    %c7 = arith.constant 7 : index
    %c0_49 = arith.constant 0 : index
    %c0_50 = arith.constant 0 : index
    %69 = vector.load %arg3[%c7, %c0_49, %c0_50] : memref<9x4x128xbf16, #tpu.memory_space<vmem>>, vector<1x4x128xbf16>
    %70 = vector.shape_cast %69 : vector<1x4x128xbf16> to vector<4x128xbf16>
    %cst_51 = arith.constant dense<0.000000e+00> : vector<128x128xf32>
    %71 = tpu.matmul %68, %70, %cst_51 {dimension_numbers = #tpu.dot_dimension_numbers<[1], [0], [0], [1], [0, 0, 1, 1], [], []>} : vector<128x4xbf16>, vector<4x128xbf16>, vector<128x128xf32> -> vector<128x128xf32>
    %72 = arith.addf %63, %71 : vector<128x128xf32>
    %c2_i32_52 = arith.constant 2 : i32
    %73 = arith.addi %1, %c2_i32_52 : i32
    %c0_53 = arith.constant 0 : index
    %74 = arith.index_cast %73 : i32 to index
    %c2_54 = arith.constant 2 : index
    %c0_55 = arith.constant 0 : index
    %75 = vector.load %arg2[%c0_53, %74, %c2_54, %c0_55] : memref<1x18x18x4xbf16, #tpu.memory_space<vmem>>, vector<1x8x16x4xbf16>
    %76 = vector.shape_cast %75 : vector<1x8x16x4xbf16> to vector<8x16x4xbf16>
    %77 = vector.shape_cast %76 : vector<8x16x4xbf16> to vector<128x4xbf16>
    %c8 = arith.constant 8 : index
    %c0_56 = arith.constant 0 : index
    %c0_57 = arith.constant 0 : index
    %78 = vector.load %arg3[%c8, %c0_56, %c0_57] : memref<9x4x128xbf16, #tpu.memory_space<vmem>>, vector<1x4x128xbf16>
    %79 = vector.shape_cast %78 : vector<1x4x128xbf16> to vector<4x128xbf16>
    %cst_58 = arith.constant dense<0.000000e+00> : vector<128x128xf32>
    %80 = tpu.matmul %77, %79, %cst_58 {dimension_numbers = #tpu.dot_dimension_numbers<[1], [0], [0], [1], [0, 0, 1, 1], [], []>} : vector<128x4xbf16>, vector<4x128xbf16>, vector<128x128xf32> -> vector<128x128xf32>
    %81 = arith.addf %72, %80 : vector<128x128xf32>
    %82 = arith.truncf %81 : vector<128x128xf32> to vector<128x128xbf16>
    %c0_59 = arith.constant 0 : index
    %c0_60 = arith.constant 0 : index
    %c0_61 = arith.constant 0 : index
    %83 = vector.load %arg4[%c0_59, %c0_60, %c0_61] : memref<1x128x128xbf16, #tpu.memory_space<vmem>>, vector<1x128x128xbf16>
    %84 = vector.shape_cast %83 : vector<1x128x128xbf16> to vector<128x128xbf16>
    %85 = vector.shape_cast %82 : vector<128x128xbf16> to vector<1x128x128xbf16>
    tpu.vector_store %arg4[%c0_59, %c0_60, %c0_61], %85 {strides = array<i32>} : memref<1x128x128xbf16, #tpu.memory_space<vmem>>, vector<1x128x128xbf16>,
    %cst_62 = arith.constant dense<0.000000e+00> : vector<128xf32>
    %86 = vector.multi_reduction <add>, %81, %cst_62 [0] : vector<128x128xf32> to vector<128xf32>
    %87 = vector.shape_cast %86 : vector<128xf32> to vector<1x128xf32>
    %88 = arith.mulf %81, %81 : vector<128x128xf32>
    %cst_63 = arith.constant dense<0.000000e+00> : vector<128xf32>
    %89 = vector.multi_reduction <add>, %88, %cst_63 [0] : vector<128x128xf32> to vector<128xf32>
    %90 = vector.shape_cast %89 : vector<128xf32> to vector<1x128xf32>
    %91 = tpu.concatenate %87, %90 in 0 : vector<1x128xf32>, vector<1x128xf32> -> vector<2x128xf32>
    %c0_64 = arith.constant 0 : index
    %c0_65 = arith.constant 0 : index
    %c0_66 = arith.constant 0 : index
    %c0_67 = arith.constant 0 : index
    %92 = vector.load %arg5[%c0_64, %c0_65, %c0_66, %c0_67] : memref<1x1x2x128xf32, #tpu.memory_space<vmem>>, vector<1x1x2x128xf32>
    %93 = vector.shape_cast %92 : vector<1x1x2x128xf32> to vector<2x128xf32>
    %94 = vector.shape_cast %91 : vector<2x128xf32> to vector<1x1x2x128xf32>
    tpu.vector_store %arg5[%c0_64, %c0_65, %c0_66, %c0_67], %94 {strides = array<i32>} : memref<1x1x2x128xf32, #tpu.memory_space<vmem>>, vector<1x1x2x128xf32>,
    return
  }
  func.func @transform_0(%arg0: i32, %arg1: i32) -> (i32, i32, i32, i32) {
    %c0_i32 = arith.constant 0 : i32
    %c0_i32_0 = arith.constant 0 : i32
    %c0_i32_1 = arith.constant 0 : i32
    %c0_i32_2 = arith.constant 0 : i32
    return %arg0, %c0_i32, %c0_i32_0, %c0_i32_1 : i32, i32, i32, i32
  }
  func.func @transform_1(%arg0: i32, %arg1: i32) -> (i32, i32, i32) {
    %c0_i32 = arith.constant 0 : i32
    %c0_i32_0 = arith.constant 0 : i32
    %c0_i32_1 = arith.constant 0 : i32
    %c0_i32_2 = arith.constant 0 : i32
    return %c0_i32, %c0_i32_0, %c0_i32_1 : i32, i32, i32
  }
  func.func @transform_2(%arg0: i32, %arg1: i32) -> (i32, i32, i32) {
    %c0_i32 = arith.constant 0 : i32
    %c0_i32_0 = arith.constant 0 : i32
    return %arg0, %arg1, %c0_i32 : i32, i32, i32
  }
  func.func @transform_3(%arg0: i32, %arg1: i32) -> (i32, i32, i32, i32) {
    %c0_i32 = arith.constant 0 : i32
    %c0_i32_0 = arith.constant 0 : i32
    %c0_i32_1 = arith.constant 0 : i32
    return %arg0, %arg1, %c0_i32, %c0_i32_0 : i32, i32, i32, i32
  }
}

</mosaic_0001>

<llo_original>
// kernel: tpu_custom_call.1
$region0: #{tpu_custom_call.1}
  #allocation0 [shape = 'u32[]', space=smem, size = 0x4, offset = 0x4, fixed_abs, tag = 'smem constant byte address 0x4 - core index']
  #allocation1 [shape = 'u32[144,128]{1,0:T(1,128)}', space=vmem, size = 0x12000, scoped, tag = 'internal scratch']
  %s0 = inlined_call_operand.vmem [shape: bf16[2,18,18,4], index: 0, kind: input, shape index: {}]
  %s1 = inlined_call_operand.vmem [shape: bf16[9,4,128], index: 1, kind: input, shape index: {}]
  %s2 = inlined_call_operand.hbm [shape: bf16[2,256,128], index: 2, kind: output, shape index: {0}]
  %s3 = inlined_call_operand.hbm [shape: f32[2,2,2,128], index: 3, kind: output, shape index: {1}]
  %4 = xla_tuple %s2, %s3
  %s5 = sld [smem:[#allocation0]]
  $region49: #{tpu_custom_call.1} parent=0
    _
  %s7 = ssub.s32 1, %s5
  %s8 = scalar_select 0, %s7, %s5
  $region1: #{tpu_custom_call.1} parent=0
    #allocation2 [shape = 'u8[65536]{0}', space=vmem, size = 0x10000, scoped, tag = 'output window, operand 0']
    #allocation3 [shape = 's32[2]{0}', space=sflag, size = 0x8, scoped, tag = 'scoped memory for tpu_custom_call.1']
    #allocation4 [shape = 'u8[2048]{0}', space=vmem, size = 0x800, scoped, tag = 'output window, operand 1']
    #allocation5 [shape = 's32[2]{0}', space=sflag, size = 0x8, scoped, tag = 'scoped memory for tpu_custom_call.1']
    %9 = vsyncpa [#allocation3], 0
    %s10 = scalar_lea.sflag [#allocation3], 1
    %11 = vsyncpa %s10, 0
    %12 = vsyncpa [#allocation5], 0
    %s13 = scalar_lea.sflag [#allocation5], 1
    %14 = vsyncpa %s13, 0
    loop: start=0, step=1, limit=6
    $region2: #{tpu_custom_call.1} parent=1 // loop_pre_header
      _
    $region3: #{tpu_custom_call.1} parent=1 // loop_header
      %s16 = sphi 0, %s20
      %p17 = scmp.ge.s32.totalorder %s16, 6
      %s23 = sphi 0, %s35
      %s24 = sphi 0, %s31
      %s25 = sphi 0, %s23
      %s26 = sphi 0, %s24
      %s27 = sphi 0, %s25
      %s28 = sphi 0, %s26
      %s38 = sphi 0, %s40
      %s41 = sphi 0, %s38
      %s42 = sphi 0, %s41
      %s58 = sphi 0, %s42
      %s62 = sphi 0, %s62
      %s64 = sphi 0, %s62
      %s65 = sphi 0, %s64
      %s79 = sphi 0, %s65
      %s87 = sphi 0, %s89
      %s90 = sphi 0, %s87
      %s91 = sphi 0, %s90
      %s107 = sphi 0, %s91
      %s115 = sphi 0, %s117
      %s118 = sphi 0, %s115
      %s119 = sphi 0, %s118
      %s135 = sphi 0, %s119
    $region4: #{tpu_custom_call.1} parent=1 // loop_header_branch
      %19 = sbr.rel (%p17) target = $region8
    $region5: #{tpu_custom_call.1} parent=1 // loop_body
      %s21 = ssub.s32 %s16, 1
      %s22 = ssub.s32 %s16, 2
      %s29 = sadd.s32 1, %s24
      %p30 = scmp.ge.s32.totalorder %s29, 2
      %s31 = scalar_select %p30, 0, %s29
      %s32 = sadd.s32 1, %s23
      %s33 = scalar_select %p30, %s32, %s23
      %p34 = scmp.ge.s32.totalorder %s33, 2
      %s35 = scalar_select %p34, 0, %s33
      %s36 = ssub.s32 %s23, %s35
      %p37 = scmp.eq.s32.totalorder %s36, 0
      %s39 = sadd.s32 %s38, 1
      %s40 = scalar_select %p37, %s38, %s39
      %p43 = pneg %p37
      %p44 = scmp.eq.s32.totalorder %s16, 3
      %p45 = por %p43, %p44
      %p46 = scmp.ne.s32.totalorder %s38, %s41
      %p47 = scmp.eq.s32.totalorder %s16, 0
      %p48 = por %p46, %p47
      %p49 = scmp.ne.s32.totalorder %s38, %s41
      %p50 = scmp.eq.s32.totalorder %s21, 3
      %p51 = por %p49, %p50
      %p52 = scmp.ne.s32.totalorder %s41, %s42
      %p53 = scmp.eq.s32.totalorder %s21, 0
      %p54 = por %p52, %p53
      %p55 = scmp.ne.s32.totalorder %s41, %s42
      %p56 = scmp.eq.s32.totalorder %s22, 3
      %p57 = por %p55, %p56
      %p59 = scmp.ne.s32.totalorder %s42, %s58
      %p60 = scmp.eq.s32.totalorder %s22, 0
      %p61 = por %p59, %p60
      %s63 = sadd.s32 %s62, 1
      %p66 = scmp.eq.s32.totalorder %s16, 3
      %p67 = scmp.ne.s32.totalorder %s62, %s64
      %p68 = scmp.eq.s32.totalorder %s16, 0
      %p69 = por %p67, %p68
      %p70 = scmp.ne.s32.totalorder %s62, %s64
      %p71 = scmp.eq.s32.totalorder %s21, 3
      %p72 = por %p70, %p71
      %p73 = scmp.ne.s32.totalorder %s64, %s65
      %p74 = scmp.eq.s32.totalorder %s21, 0
      %p75 = por %p73, %p74
      %p76 = scmp.ne.s32.totalorder %s64, %s65
      %p77 = scmp.eq.s32.totalorder %s22, 3
      %p78 = por %p76, %p77
      %p80 = scmp.ne.s32.totalorder %s65, %s79
      %p81 = scmp.eq.s32.totalorder %s22, 0
      %p82 = por %p80, %p81
      %s83 = ssub.s32 %s23, %s35
      %s84 = ssub.s32 %s24, %s31
      %s85 = sor.u32 %s83, %s84
      %p86 = scmp.eq.s32.totalorder %s85, 0
      %s88 = sadd.s32 %s87, 1
      %s89 = scalar_select %p86, %s87, %s88
      %p92 = pneg %p86
      %p93 = scmp.eq.s32.totalorder %s16, 3
      %p94 = por %p92, %p93
      %p95 = scmp.ne.s32.totalorder %s87, %s90
      %p96 = scmp.eq.s32.totalorder %s16, 0
      %p97 = por %p95, %p96
      %p98 = scmp.ne.s32.totalorder %s87, %s90
      %p99 = scmp.eq.s32.totalorder %s21, 3
      %p100 = por %p98, %p99
      %p101 = scmp.ne.s32.totalorder %s90, %s91
      %p102 = scmp.eq.s32.totalorder %s21, 0
      %p103 = por %p101, %p102
      %p104 = scmp.ne.s32.totalorder %s90, %s91
      %p105 = scmp.eq.s32.totalorder %s22, 3
      %p106 = por %p104, %p105
      %p108 = scmp.ne.s32.totalorder %s91, %s107
      %p109 = scmp.eq.s32.totalorder %s22, 0
      %p110 = por %p108, %p109
      %s111 = ssub.s32 %s23, %s35
      %s112 = ssub.s32 %s24, %s31
      %s113 = sor.u32 %s111, %s112
      %p114 = scmp.eq.s32.totalorder %s113, 0
      %s116 = sadd.s32 %s115, 1
      %s117 = scalar_select %p114, %s115, %s116
      %p120 = pneg %p114
      %p121 = scmp.eq.s32.totalorder %s16, 3
      %p122 = por %p120, %p121
      %p123 = scmp.ne.s32.totalorder %s115, %s118
      %p124 = scmp.eq.s32.totalorder %s16, 0
      %p125 = por %p123, %p124
      %p126 = scmp.ne.s32.totalorder %s115, %s118
      %p127 = scmp.eq.s32.totalorder %s21, 3
      %p128 = por %p126, %p127
      %p129 = scmp.ne.s32.totalorder %s118, %s119
      %p130 = scmp.eq.s32.totalorder %s21, 0
      %p131 = por %p129, %p130
      %p132 = scmp.ne.s32.totalorder %s118, %s119
      %p133 = scmp.eq.s32.totalorder %s22, 3
      %p134 = por %p132, %p133
      %p136 = scmp.ne.s32.totalorder %s119, %s135
      %p137 = scmp.eq.s32.totalorder %s22, 0
      %p138 = por %p136, %p137
      %p139 = scmp.le.s32.totalorder 1, %s16
      %p140 = scmp.lt.s32.totalorder %s16, 5
      %p141 = pnand %p139, %p140
      %p142 = pneg %p141
      // Predicated region
      $region9: #{tpu_custom_call.1} parent=5 // pred_check
        _
      $region10: #{tpu_custom_call.1} parent=5 // pred_check_branch
        %144 = sbr.rel (%p141) target = $region12
      $region11: #{tpu_custom_call.1} parent=5 // pred_region
        %s145 = ssub.s32 %s16, 1
        // Predicated region
        $region13: #{tpu_custom_call.1} parent=11 // pred_check
          %p146 = pneg %p75
        $region14: #{tpu_custom_call.1} parent=11 // pred_check_branch
          %148 = sbr.rel (%p146) target = $region16
        $region15: #{tpu_custom_call.1} parent=11 // pred_region
          _
        $region16: #{tpu_custom_call.1} parent=11 // pred_fallthru
          _
      $region12: #{tpu_custom_call.1} parent=5 // pred_fallthru
        _
      %p149 = scmp.lt.s32.totalorder %s16, 4
      // Predicated region
      $region17: #{tpu_custom_call.1} parent=5 // pred_check
        %p150 = pneg %p149
      $region18: #{tpu_custom_call.1} parent=5 // pred_check_branch
        %152 = sbr.rel (%p150) target = $region20
      $region19: #{tpu_custom_call.1} parent=5 // pred_region
        // Predicated region
        $region21: #{tpu_custom_call.1} parent=19 // pred_check
          %p153 = pneg %p48
        $region22: #{tpu_custom_call.1} parent=19 // pred_check_branch
          %155 = sbr.rel (%p153) target = $region24
        $region23: #{tpu_custom_call.1} parent=19 // pred_region
          %p156 = scmp.lt.s32.totalorder %s23, 1
          %s157 = scalar_select %p156, %s23, 1
          %s158 = smul.addr %s157, 54
          %s159 = smul.addr %s158, 4
          %s160 = scalar_lea.vmem %s0, %s159
        $region24: #{tpu_custom_call.1} parent=19 // pred_fallthru
          _
      $region20: #{tpu_custom_call.1} parent=5 // pred_fallthru
        _
      %p161 = scmp.le.s32.totalorder 1, %s16
      %p162 = scmp.lt.s32.totalorder %s16, 5
      %p163 = pnand %p161, %p162
      %p164 = pneg %p163
      // Predicated region
      $region25: #{tpu_custom_call.1} parent=5 // pred_check
        _
      $region26: #{tpu_custom_call.1} parent=5 // pred_check_branch
        %166 = sbr.rel (%p163) target = $region28
      $region27: #{tpu_custom_call.1} parent=5 // pred_region
        %s167 = ssub.s32 %s16, 1
        %p168 = scmp.lt.s32.totalorder %s25, 1
        %s169 = scalar_select %p168, %s25, 1
        %s170 = smul.addr %s169, 54
        %s171 = smul.addr %s170, 4
        %s172 = scalar_lea.vmem %s0, %s171
        %p173 = pneg %p54
        %p174 = pneg %p51
        %p175 = pneg %p75
        %p176 = pneg %p72
        %p177 = pneg %p103
        %p178 = pneg %p100
        %s179 = sand.u32 %s90, 1
        %s180 = scalar_lea.sflag [#allocation3], %s179
        %s181 = sand.u32 %s90, 1
        %s182 = smul.addr %s181, 64
        %s183 = scalar_lea.vmem [#allocation2], %s182
        %p184 = pneg %p131
        %p185 = pneg %p128
        %s186 = sand.u32 %s118, 1
        %s187 = scalar_lea.sflag [#allocation5], %s186
        %s188 = sand.u32 %s118, 1
        %s189 = smul.addr %s188, 2
        %s190 = scalar_lea.vmem [#allocation4], %s189
        %p191 = scmp.lt.s32.totalorder %s25, 1
        %s192 = scalar_select %p191, %s25, 1
        %s193 = smul.addr %s192, 54
        %s194 = smul.addr %s193, 4
        %s195 = scalar_lea.vmem %s0, %s194
        %s196 = smul.u32 16, %s26
        %s198 = smul.u32 %s26, 8
        %s199 = smul.u32 %s198, 3
        %s200 = smul.addr %s199, 4
        %s201 = scalar_lea.vmem %s195, %s200
        %v202 = vld [vmem:[%s201] sm:$0xf]
        %v203 = vld [vmem:[%s201 + $0x4] sm:$0xf]
        %v204 = vld [vmem:[%s201 + $0xc] sm:$0xf]
        %v205 = vld [vmem:[%s201 + $0x10] sm:$0xf]
        %v206 = vld [vmem:[%s201 + $0x18] sm:$0xf]
        %v207 = vld [vmem:[%s201 + $0x1c] sm:$0xf]
        %v208 = vld [vmem:[%s201 + $0x24] sm:$0xf]
        %v209 = vld [vmem:[%s201 + $0x28] sm:$0xf]
        %v210 = vld [vmem:[%s201 + $0x30] sm:$0xf]
        %v211 = vld [vmem:[%s201 + $0x34] sm:$0xf]
        %v212 = vld [vmem:[%s201 + $0x3c] sm:$0xf]
        %v213 = vld [vmem:[%s201 + $0x40] sm:$0xf]
        %v214 = vld [vmem:[%s201 + $0x48] sm:$0xf]
        %v215 = vld [vmem:[%s201 + $0x4c] sm:$0xf]
        %v216 = vld [vmem:[%s201 + $0x54] sm:$0xf]
        %v217 = vld [vmem:[%s201 + $0x58] sm:$0xf]
        %v218 = vld [vmem:[%s1] sm:$0x3]
        %v219 = vld [vmem:[%s201 + $0x8] sm:$0x1]
        %v220 = vld [vmem:[%s201 + $0x14] sm:$0x1]
        %v221 = vld [vmem:[%s201 + $0x20] sm:$0x1]
        %v222 = vld [vmem:[%s201 + $0x2c] sm:$0x1]
        %v223 = vld [vmem:[%s201 + $0x38] sm:$0x1]
        %v224 = vld [vmem:[%s201 + $0x44] sm:$0x1]
        %v225 = vld [vmem:[%s201 + $0x50] sm:$0x1]
        %v226 = vld [vmem:[%s201 + $0x5c] sm:$0x1]
        %vm227 = vsmask.f32 3328
        %vm228 = vsmask.f32 7440
        %vm229 = vmor %vm227, %vm228
        %v231 = vshrl.u32 %v202, 16
        %v233 = vrot.slane %v231, 4
        %v234 = vshll.u32 %v202, 16
        %v236 = vrot.slane %v234, 5
        %v237 = vor.u32 %v233, %v236
        %v238 = vrot.slane %v237, 4
        %v240 = vshll.u32 %v203, 16
        %v242 = vrot.slane %v240, 5
        %v243 = vsel %vm229, %v238, %v242
        %v244 = vshrl.u32 %v203, 16
        %v246 = vrot.slane %v244, 4
        %v247 = vor.u32 %v246, %v242
        %v248 = vrot.slane %v247, 4
        %v250 = vshll.u32 %v219, 16
        %v252 = vrot.slane %v250, 5
        %v253 = vsel %vm229, %v248, %v252
        %v255 = vshrl.u32 %v204, 16
        %v257 = vrot.slane %v255, 4
        %v258 = vshll.u32 %v204, 16
        %v260 = vrot.slane %v258, 5
        %v261 = vor.u32 %v257, %v260
        %v262 = vrot.slane %v261, 4
        %v264 = vshll.u32 %v205, 16
        %v266 = vrot.slane %v264, 5
        %v267 = vsel %vm229, %v262, %v266
        %v268 = vshrl.u32 %v205, 16
        %v270 = vrot.slane %v268, 4
        %v271 = vor.u32 %v270, %v266
        %v272 = vrot.slane %v271, 4
        %v274 = vshll.u32 %v220, 16
        %v276 = vrot.slane %v274, 5
        %v277 = vsel %vm229, %v272, %v276
        %v279 = vshrl.u32 %v206, 16
        %v281 = vrot.slane %v279, 4
        %v282 = vshll.u32 %v206, 16
        %v284 = vrot.slane %v282, 5
        %v285 = vor.u32 %v281, %v284
        %v286 = vrot.slane %v285, 4
        %v288 = vshll.u32 %v207, 16
        %v290 = vrot.slane %v288, 5
        %v291 = vsel %vm229, %v286, %v290
        %v292 = vshrl.u32 %v207, 16
        %v294 = vrot.slane %v292, 4
        %v295 = vor.u32 %v294, %v290
        %v296 = vrot.slane %v295, 4
        %v298 = vshll.u32 %v221, 16
        %v300 = vrot.slane %v298, 5
        %v301 = vsel %vm229, %v296, %v300
        %v303 = vshrl.u32 %v208, 16
        %v305 = vrot.slane %v303, 4
        %v306 = vshll.u32 %v208, 16
        %v308 = vrot.slane %v306, 5
        %v309 = vor.u32 %v305, %v308
        %v310 = vrot.slane %v309, 4
        %v312 = vshll.u32 %v209, 16
        %v314 = vrot.slane %v312, 5
        %v315 = vsel %vm229, %v310, %v314
        %v316 = vshrl.u32 %v209, 16
        %v318 = vrot.slane %v316, 4
        %v319 = vor.u32 %v318, %v314
        %v320 = vrot.slane %v319, 4
        %v322 = vshll.u32 %v222, 16
        %v324 = vrot.slane %v322, 5
        %v325 = vsel %vm229, %v320, %v324
        %v327 = vshrl.u32 %v210, 16
        %v329 = vrot.slane %v327, 4
        %v330 = vshll.u32 %v210, 16
        %v332 = vrot.slane %v330, 5
        %v333 = vor.u32 %v329, %v332
        %v334 = vrot.slane %v333, 4
        %v336 = vshll.u32 %v211, 16
        %v338 = vrot.slane %v336, 5
        %v339 = vsel %vm229, %v334, %v338
        %v340 = vshrl.u32 %v211, 16
        %v342 = vrot.slane %v340, 4
        %v343 = vor.u32 %v342, %v338
        %v344 = vrot.slane %v343, 4
        %v346 = vshll.u32 %v223, 16
        %v348 = vrot.slane %v346, 5
        %v349 = vsel %vm229, %v344, %v348
        %v351 = vshrl.u32 %v212, 16
        %v353 = vrot.slane %v351, 4
        %v354 = vshll.u32 %v212, 16
        %v356 = vrot.slane %v354, 5
        %v357 = vor.u32 %v353, %v356
        %v358 = vrot.slane %v357, 4
        %v360 = vshll.u32 %v213, 16
        %v362 = vrot.slane %v360, 5
        %v363 = vsel %vm229, %v358, %v362
        %v364 = vshrl.u32 %v213, 16
        %v366 = vrot.slane %v364, 4
        %v367 = vor.u32 %v366, %v362
        %v368 = vrot.slane %v367, 4
        %v370 = vshll.u32 %v224, 16
        %v372 = vrot.slane %v370, 5
        %v373 = vsel %vm229, %v368, %v372
        %v375 = vshrl.u32 %v214, 16
        %v377 = vrot.slane %v375, 4
        %v378 = vshll.u32 %v214, 16
        %v380 = vrot.slane %v378, 5
        %v381 = vor.u32 %v377, %v380
        %v382 = vrot.slane %v381, 4
        %v384 = vshll.u32 %v215, 16
        %v386 = vrot.slane %v384, 5
        %v387 = vsel %vm229, %v382, %v386
        %v388 = vshrl.u32 %v215, 16
        %v390 = vrot.slane %v388, 4
        %v391 = vor.u32 %v390, %v386
        %v392 = vrot.slane %v391, 4
        %v394 = vshll.u32 %v225, 16
        %v396 = vrot.slane %v394, 5
        %v397 = vsel %vm229, %v392, %v396
        %v399 = vshrl.u32 %v216, 16
        %v401 = vrot.slane %v399, 4
        %v402 = vshll.u32 %v216, 16
        %v404 = vrot.slane %v402, 5
        %v405 = vor.u32 %v401, %v404
        %v406 = vrot.slane %v405, 4
        %v408 = vshll.u32 %v217, 16
        %v410 = vrot.slane %v408, 5
        %v411 = vsel %vm229, %v406, %v410
        %v412 = vshrl.u32 %v217, 16
        %v414 = vrot.slane %v412, 4
        %v415 = vor.u32 %v414, %v410
        %v416 = vrot.slane %v415, 4
        %v418 = vshll.u32 %v226, 16
        %v420 = vrot.slane %v418, 5
        %v421 = vsel %vm229, %v416, %v420
        %s422 = scalar_lea.vmem %s1, 2
        %v423 = vld [vmem:[%s422] sm:$0x3]
        %v424 = vunpack.c.l.b16 %v243
        %v425 = vunpack.c.l.b16 %v253
        %v426 = vunpack.c.l.b16 %v267
        %v427 = vunpack.c.l.b16 %v277
        %v428 = vunpack.c.l.b16 %v291
        %v429 = vunpack.c.l.b16 %v301
        %v430 = vunpack.c.l.b16 %v315
        %v431 = vunpack.c.l.b16 %v325
        %v432 = vunpack.c.l.b16 %v339
        %v433 = vunpack.c.l.b16 %v349
        %v434 = vunpack.c.l.b16 %v363
        %v435 = vunpack.c.l.b16 %v373
        %v436 = vunpack.c.l.b16 %v387
        %v437 = vunpack.c.l.b16 %v397
        %v438 = vunpack.c.l.b16 %v411
        %v439 = vunpack.c.l.b16 %v421
        %v440 = vpack.c.b16 %v425, %v424
        %v441 = vpack.c.b16 %v427, %v426
        %v442 = vpack.c.b16 %v429, %v428
        %v443 = vpack.c.b16 %v431, %v430
        %v444 = vpack.c.b16 %v433, %v432
        %v445 = vpack.c.b16 %v435, %v434
        %v446 = vpack.c.b16 %v437, %v436
        %v447 = vpack.c.b16 %v439, %v438
        %vm448 = vcmask 31744
        %v450 = vsel %vm448, %v440, 0
        %v453 = vsel %vm448, %v441, 0
        %v456 = vsel %vm448, %v442, 0
        %v459 = vsel %vm448, %v443, 0
        %v462 = vsel %vm448, %v444, 0
        %v465 = vsel %vm448, %v445, 0
        %v468 = vsel %vm448, %v446, 0
        %v471 = vsel %vm448, %v447, 0
        %vm473 = vcmask 1041408
        %v475 = vsel %vm473, %v423, 0
        %477 = vmatprep.subr.bf16.mxu0 0
        %478 = vmatpush1.bf16.msra.mxu0 %v475
        %479 = vmatprep.subr.bf16.mxu0 0
        %480 = vmatpush1.bf16.msra.mxu0 0
        %481 = vmatprep.subr.bf16.mxu0 0
        %482 = vmatpush1.bf16.msra.mxu0 0
        %483 = vmatprep.subr.bf16.mxu0 0
        %484 = vmatpush1.bf16.msra.mxu0 0
        %485 = vmatprep.subr.bf16.mxu0 0
        %486 = vmatpush1.bf16.msra.mxu0 0
        %487 = vmatprep.subr.bf16.mxu0 0
        %488 = vmatpush1.bf16.msra.mxu0 0
        %489 = vmatprep.subr.bf16.mxu0 0
        %490 = vmatpush1.bf16.msra.mxu0 0
        %491 = vmatprep.subr.bf16.mxu0 0
        %492 = vmatpush1.bf16.msra.mxu0 0
        %493 = vmatprep.subr.bf16.mxu0 0
        %494 = vmatpush1.bf16.msra.mxu0 0
        %495 = vmatprep.subr.bf16.mxu0 0
        %496 = vmatpush1.bf16.msra.mxu0 0
        %497 = vmatprep.subr.bf16.mxu0 0
        %498 = vmatpush1.bf16.msra.mxu0 0
        %499 = vmatprep.subr.bf16.mxu0 0
        %500 = vmatpush1.bf16.msra.mxu0 0
        %501 = vmatprep.subr.bf16.mxu0 0
        %502 = vmatpush1.bf16.msra.mxu0 0
        %503 = vmatprep.subr.bf16.mxu0 0
        %504 = vmatpush1.bf16.msra.mxu0 0
        %505 = vmatprep.subr.bf16.mxu0 0
        %506 = vmatpush1.bf16.msra.mxu0 0
        %507 = vmatprep.subr.bf16.mxu0 0
        %508 = vmatpush1.bf16.msra.mxu0 0
        %509 = vmatprep.mubr.bf16.mxu0 0
        %510 = vmatmul.mubr.bf16.gmra.mrb[0].mxu0 %v450
        %v511 = vpop.f32.mrb[0].mxu0
        %v512 = vadd.f32 0.0, %v511
        %v513 = vpop.f32.mrb[0].mxu0
        %v514 = vpop.f32.mrb[0].mxu0
        %v515 = vadd.f32 0.0, %v514
        %v516 = vpop.f32.mrb[0].mxu0
        %517 = vmatprep.mubr.bf16.mxu0 0
        %518 = vmatmul.mubr.bf16.gmra.mrb[0].mxu0 %v453
        %v519 = vpop.f32.mrb[0].mxu0
        %v520 = vadd.f32 0.0, %v519
        %v521 = vpop.f32.mrb[0].mxu0
        %v522 = vpop.f32.mrb[0].mxu0
        %v523 = vadd.f32 0.0, %v522
        %v524 = vpop.f32.mrb[0].mxu0
        %525 = vmatprep.mubr.bf16.mxu0 0
        %526 = vmatmul.mubr.bf16.gmra.mrb[0].mxu0 %v456
        %v527 = vpop.f32.mrb[0].mxu0
        %v528 = vadd.f32 0.0, %v527
        %v529 = vpop.f32.mrb[0].mxu0
        %v530 = vpop.f32.mrb[0].mxu0
        %v531 = vadd.f32 0.0, %v530
        %v532 = vpop.f32.mrb[0].mxu0
        %533 = vmatprep.mubr.bf16.mxu0 0
        %534 = vmatmul.mubr.bf16.gmra.mrb[0].mxu0 %v459
        %v535 = vpop.f32.mrb[0].mxu0
        %v536 = vadd.f32 0.0, %v535
        %v537 = vpop.f32.mrb[0].mxu0
        %v538 = vpop.f32.mrb[0].mxu0
        %v539 = vadd.f32 0.0, %v538
        %v540 = vpop.f32.mrb[0].mxu0
        %541 = vmatprep.mubr.bf16.mxu0 0
        %542 = vmatmul.mubr.bf16.gmra.mrb[0].mxu0 %v462
        %v543 = vpop.f32.mrb[0].mxu0
        %v544 = vadd.f32 0.0, %v543
        %v545 = vpop.f32.mrb[0].mxu0
        %v546 = vpop.f32.mrb[0].mxu0
        %v547 = vadd.f32 0.0, %v546
        %v548 = vpop.f32.mrb[0].mxu0
        %549 = vmatprep.mubr.bf16.mxu0 0
        %550 = vmatmul.mubr.bf16.gmra.mrb[0].mxu0 %v465
        %v551 = vpop.f32.mrb[0].mxu0
        %v552 = vadd.f32 0.0, %v551
        %v553 = vpop.f32.mrb[0].mxu0
        %v554 = vpop.f32.mrb[0].mxu0
        %v555 = vadd.f32 0.0, %v554
        %v556 = vpop.f32.mrb[0].mxu0
        %557 = vmatprep.mubr.bf16.mxu0 0
        %558 = vmatmul.mubr.bf16.gmra.mrb[0].mxu0 %v468
        %v559 = vpop.f32.mrb[0].mxu0
        %v560 = vadd.f32 0.0, %v559
        %v561 = vpop.f32.mrb[0].mxu0
        %v562 = vpop.f32.mrb[0].mxu0
        %v563 = vadd.f32 0.0, %v562
        %v564 = vpop.f32.mrb[0].mxu0
        %565 = vmatprep.mubr.bf16.mxu0 0
        %566 = vmatmul.mubr.bf16.gmra.mrb[0].mxu0 %v471
        %v567 = vpop.f32.mrb[0].mxu0
        %v568 = vadd.f32 0.0, %v567
        %v569 = vpop.f32.mrb[0].mxu0
        %v570 = vpop.f32.mrb[0].mxu0
        %v571 = vadd.f32 0.0, %v570
        %v572 = vpop.f32.mrb[0].mxu0
        %573 = vdwg.mxu0
        %v590 = vunpack.c.l.b16 %v202
        %v591 = vunpack.c.l.b16 %v203
        %v592 = vunpack.c.l.b16 %v204
        %v593 = vunpack.c.l.b16 %v205
        %v594 = vunpack.c.l.b16 %v206
        %v595 = vunpack.c.l.b16 %v207
        %v596 = vunpack.c.l.b16 %v208
        %v597 = vunpack.c.l.b16 %v209
        %v598 = vunpack.c.l.b16 %v210
        %v599 = vunpack.c.l.b16 %v211
        %v600 = vunpack.c.l.b16 %v212
        %v601 = vunpack.c.l.b16 %v213
        %v602 = vunpack.c.l.b16 %v214
        %v603 = vunpack.c.l.b16 %v215
        %v604 = vunpack.c.l.b16 %v216
        %v605 = vunpack.c.l.b16 %v217
        %v606 = vpack.c.b16 %v591, %v590
        %v607 = vpack.c.b16 %v593, %v592
        %v608 = vpack.c.b16 %v595, %v594
        %v609 = vpack.c.b16 %v597, %v596
        %v610 = vpack.c.b16 %v599, %v598
        %v611 = vpack.c.b16 %v601, %v600
        %v612 = vpack.c.b16 %v603, %v602
        %v613 = vpack.c.b16 %v605, %v604
        %v615 = vsel %vm448, %v606, 0
        %v618 = vsel %vm448, %v607, 0
        %v621 = vsel %vm448, %v608, 0
        %v624 = vsel %vm448, %v609, 0
        %v627 = vsel %vm448, %v610, 0
        %v630 = vsel %vm448, %v611, 0
        %v633 = vsel %vm448, %v612, 0
        %v636 = vsel %vm448, %v613, 0
        %v639 = vsel %vm473, %v218, 0
        %641 = vmatprep.subr.bf16.mxu0 0
        %642 = vmatpush1.bf16.msra.mxu0 %v639
        %643 = vmatprep.subr.bf16.mxu0 0
        %644 = vmatpush1.bf16.msra.mxu0 0
        %645 = vmatprep.subr.bf16.mxu0 0
        %646 = vmatpush1.bf16.msra.mxu0 0
        %647 = vmatprep.subr.bf16.mxu0 0
        %648 = vmatpush1.bf16.msra.mxu0 0
        %649 = vmatprep.subr.bf16.mxu0 0
        %650 = vmatpush1.bf16.msra.mxu0 0
        %651 = vmatprep.subr.bf16.mxu0 0
        %652 = vmatpush1.bf16.msra.mxu0 0
        %653 = vmatprep.subr.bf16.mxu0 0
        %654 = vmatpush1.bf16.msra.mxu0 0
        %655 = vmatprep.subr.bf16.mxu0 0
        %656 = vmatpush1.bf16.msra.mxu0 0
        %657 = vmatprep.subr.bf16.mxu0 0
        %658 = vmatpush1.bf16.msra.mxu0 0
        %659 = vmatprep.subr.bf16.mxu0 0
        %660 = vmatpush1.bf16.msra.mxu0 0
        %661 = vmatprep.subr.bf16.mxu0 0
        %662 = vmatpush1.bf16.msra.mxu0 0
        %663 = vmatprep.subr.bf16.mxu0 0
        %664 = vmatpush1.bf16.msra.mxu0 0
        %665 = vmatprep.subr.bf16.mxu0 0
        %666 = vmatpush1.bf16.msra.mxu0 0
        %667 = vmatprep.subr.bf16.mxu0 0
        %668 = vmatpush1.bf16.msra.mxu0 0
        %669 = vmatprep.subr.bf16.mxu0 0
        %670 = vmatpush1.bf16.msra.mxu0 0
        %671 = vmatprep.subr.bf16.mxu0 0
        %672 = vmatpush1.bf16.msra.mxu0 0
        %673 = vmatprep.mubr.bf16.mxu0 0
        %674 = vmatmul.mubr.bf16.gmra.mrb[0].mxu0 %v615
        %v675 = vpop.f32.mrb[0].mxu0
        %v676 = vadd.f32 %v512, %v675
        %v677 = vpop.f32.mrb[0].mxu0
        %v678 = vpop.f32.mrb[0].mxu0
        %v679 = vadd.f32 %v515, %v678
        %v680 = vpop.f32.mrb[0].mxu0
        %681 = vmatprep.mubr.bf16.mxu0 0
        %682 = vmatmul.mubr.bf16.gmra.mrb[0].mxu0 %v618
        %v683 = vpop.f32.mrb[0].mxu0
        %v684 = vadd.f32 %v520, %v683
        %v685 = vpop.f32.mrb[0].mxu0
        %v686 = vpop.f32.mrb[0].mxu0
        %v687 = vadd.f32 %v523, %v686
        %v688 = vpop.f32.mrb[0].mxu0
        %689 = vmatprep.mubr.bf16.mxu0 0
        %690 = vmatmul.mubr.bf16.gmra.mrb[0].mxu0 %v621
        %v691 = vpop.f32.mrb[0].mxu0
        %v692 = vadd.f32 %v528, %v691
        %v693 = vpop.f32.mrb[0].mxu0
        %v694 = vpop.f32.mrb[0].mxu0
        %v695 = vadd.f32 %v531, %v694
        %v696 = vpop.f32.mrb[0].mxu0
        %697 = vmatprep.mubr.bf16.mxu0 0
        %698 = vmatmul.mubr.bf16.gmra.mrb[0].mxu0 %v624
        %v699 = vpop.f32.mrb[0].mxu0
        %v700 = vadd.f32 %v536, %v699
        %v701 = vpop.f32.mrb[0].mxu0
        %v702 = vpop.f32.mrb[0].mxu0
        %v703 = vadd.f32 %v539, %v702
        %v704 = vpop.f32.mrb[0].mxu0
        %705 = vmatprep.mubr.bf16.mxu0 0
        %706 = vmatmul.mubr.bf16.gmra.mrb[0].mxu0 %v627
        %v707 = vpop.f32.mrb[0].mxu0
        %v708 = vadd.f32 %v544, %v707
        %v709 = vpop.f32.mrb[0].mxu0
        %v710 = vpop.f32.mrb[0].mxu0
        %v711 = vadd.f32 %v547, %v710
        %v712 = vpop.f32.mrb[0].mxu0
        %713 = vmatprep.mubr.bf16.mxu0 0
        %714 = vmatmul.mubr.bf16.gmra.mrb[0].mxu0 %v630
        %v715 = vpop.f32.mrb[0].mxu0
        %v716 = vadd.f32 %v552, %v715
        %v717 = vpop.f32.mrb[0].mxu0
        %v718 = vpop.f32.mrb[0].mxu0
        %v719 = vadd.f32 %v555, %v718
        %v720 = vpop.f32.mrb[0].mxu0
        %721 = vmatprep.mubr.bf16.mxu0 0
        %722 = vmatmul.mubr.bf16.gmra.mrb[0].mxu0 %v633
        %v723 = vpop.f32.mrb[0].mxu0
        %v724 = vadd.f32 %v560, %v723
        %v725 = vpop.f32.mrb[0].mxu0
        %v726 = vpop.f32.mrb[0].mxu0
        %v727 = vadd.f32 %v563, %v726
        %v728 = vpop.f32.mrb[0].mxu0
        %729 = vmatprep.mubr.bf16.mxu0 0
        %730 = vmatmul.mubr.bf16.gmra.mrb[0].mxu0 %v636
        %v731 = vpop.f32.mrb[0].mxu0
        %v732 = vadd.f32 %v568, %v731
        %v733 = vpop.f32.mrb[0].mxu0
        %v734 = vpop.f32.mrb[0].mxu0
        %v735 = vadd.f32 %v571, %v734
        %v736 = vpop.f32.mrb[0].mxu0
        %737 = vdwg.mxu0
        %v738 = vld [vmem:[%s201] sm:$0xe]
        %v739 = vld [vmem:[%s201 + $0xc] sm:$0xe]
        %v740 = vld [vmem:[%s201 + $0x18] sm:$0xe]
        %v741 = vld [vmem:[%s201 + $0x24] sm:$0xe]
        %v742 = vld [vmem:[%s201 + $0x30] sm:$0xe]
        %v743 = vld [vmem:[%s201 + $0x3c] sm:$0xe]
        %v744 = vld [vmem:[%s201 + $0x48] sm:$0xe]
        %v745 = vld [vmem:[%s201 + $0x54] sm:$0xe]
        %vm762 = vcmask 1042432
        %vm763 = vcmask 1046532
        %vm764 = vmor %vm762, %vm763
        %v765 = vrot.slane %v738, 5
        %v766 = vrot.slane %v765, 4
        %v767 = vrot.slane %v203, 5
        %v768 = vsel %vm764, %v766, %v767
        %v769 = vrot.slane %v767, 4
        %v770 = vrot.slane %v219, 5
        %v771 = vsel %vm764, %v769, %v770
        %v772 = vrot.slane %v739, 5
        %v773 = vrot.slane %v772, 4
        %v774 = vrot.slane %v205, 5
        %v775 = vsel %vm764, %v773, %v774
        %v776 = vrot.slane %v774, 4
        %v777 = vrot.slane %v220, 5
        %v778 = vsel %vm764, %v776, %v777
        %v779 = vrot.slane %v740, 5
        %v780 = vrot.slane %v779, 4
        %v781 = vrot.slane %v207, 5
        %v782 = vsel %vm764, %v780, %v781
        %v783 = vrot.slane %v781, 4
        %v784 = vrot.slane %v221, 5
        %v785 = vsel %vm764, %v783, %v784
        %v786 = vrot.slane %v741, 5
        %v787 = vrot.slane %v786, 4
        %v788 = vrot.slane %v209, 5
        %v789 = vsel %vm764, %v787, %v788
        %v790 = vrot.slane %v788, 4
        %v791 = vrot.slane %v222, 5
        %v792 = vsel %vm764, %v790, %v791
        %v793 = vrot.slane %v742, 5
        %v794 = vrot.slane %v793, 4
        %v795 = vrot.slane %v211, 5
        %v796 = vsel %vm764, %v794, %v795
        %v797 = vrot.slane %v795, 4
        %v798 = vrot.slane %v223, 5
        %v799 = vsel %vm764, %v797, %v798
        %v800 = vrot.slane %v743, 5
        %v801 = vrot.slane %v800, 4
        %v802 = vrot.slane %v213, 5
        %v803 = vsel %vm764, %v801, %v802
        %v804 = vrot.slane %v802, 4
        %v805 = vrot.slane %v224, 5
        %v806 = vsel %vm764, %v804, %v805
        %v807 = vrot.slane %v744, 5
        %v808 = vrot.slane %v807, 4
        %v809 = vrot.slane %v215, 5
        %v810 = vsel %vm764, %v808, %v809
        %v811 = vrot.slane %v809, 4
        %v812 = vrot.slane %v225, 5
        %v813 = vsel %vm764, %v811, %v812
        %v814 = vrot.slane %v745, 5
        %v815 = vrot.slane %v814, 4
        %v816 = vrot.slane %v217, 5
        %v817 = vsel %vm764, %v815, %v816
        %v818 = vrot.slane %v816, 4
        %v819 = vrot.slane %v226, 5
        %v820 = vsel %vm764, %v818, %v819
        %s821 = scalar_lea.vmem %s1, 4
        %v822 = vld [vmem:[%s821] sm:$0x3]
        %v823 = vunpack.c.l.b16 %v768
        %v824 = vunpack.c.l.b16 %v771
        %v825 = vunpack.c.l.b16 %v775
        %v826 = vunpack.c.l.b16 %v778
        %v827 = vunpack.c.l.b16 %v782
        %v828 = vunpack.c.l.b16 %v785
        %v829 = vunpack.c.l.b16 %v789
        %v830 = vunpack.c.l.b16 %v792
        %v831 = vunpack.c.l.b16 %v796
        %v832 = vunpack.c.l.b16 %v799
        %v833 = vunpack.c.l.b16 %v803
        %v834 = vunpack.c.l.b16 %v806
        %v835 = vunpack.c.l.b16 %v810
        %v836 = vunpack.c.l.b16 %v813
        %v837 = vunpack.c.l.b16 %v817
        %v838 = vunpack.c.l.b16 %v820
        %v839 = vpack.c.b16 %v824, %v823
        %v840 = vpack.c.b16 %v826, %v825
        %v841 = vpack.c.b16 %v828, %v827
        %v842 = vpack.c.b16 %v830, %v829
        %v843 = vpack.c.b16 %v832, %v831
        %v844 = vpack.c.b16 %v834, %v833
        %v845 = vpack.c.b16 %v836, %v835
        %v846 = vpack.c.b16 %v838, %v837
        %v848 = vsel %vm448, %v839, 0
        %v851 = vsel %vm448, %v840, 0
        %v854 = vsel %vm448, %v841, 0
        %v857 = vsel %vm448, %v842, 0
        %v860 = vsel %vm448, %v843, 0
        %v863 = vsel %vm448, %v844, 0
        %v866 = vsel %vm448, %v845, 0
        %v869 = vsel %vm448, %v846, 0
        %v872 = vsel %vm473, %v822, 0
        %874 = vmatprep.subr.bf16.mxu0 0
        %875 = vmatpush1.bf16.msra.mxu0 %v872
        %876 = vmatprep.subr.bf16.mxu0 0
        %877 = vmatpush1.bf16.msra.mxu0 0
        %878 = vmatprep.subr.bf16.mxu0 0
        %879 = vmatpush1.bf16.msra.mxu0 0
        %880 = vmatprep.subr.bf16.mxu0 0
        %881 = vmatpush1.bf16.msra.mxu0 0
        %882 = vmatprep.subr.bf16.mxu0 0
        %883 = vmatpush1.bf16.msra.mxu0 0
        %884 = vmatprep.subr.bf16.mxu0 0
        %885 = vmatpush1.bf16.msra.mxu0 0
        %886 = vmatprep.subr.bf16.mxu0 0
        %887 = vmatpush1.bf16.msra.mxu0 0
        %888 = vmatprep.subr.bf16.mxu0 0
        %889 = vmatpush1.bf16.msra.mxu0 0
        %890 = vmatprep.subr.bf16.mxu0 0
        %891 = vmatpush1.bf16.msra.mxu0 0
        %892 = vmatprep.subr.bf16.mxu0 0
        %893 = vmatpush1.bf16.msra.mxu0 0
        %894 = vmatprep.subr.bf16.mxu0 0
        %895 = vmatpush1.bf16.msra.mxu0 0
        %896 = vmatprep.subr.bf16.mxu0 0
        %897 = vmatpush1.bf16.msra.mxu0 0
        %898 = vmatprep.subr.bf16.mxu0 0
        %899 = vmatpush1.bf16.msra.mxu0 0
        %900 = vmatprep.subr.bf16.mxu0 0
        %901 = vmatpush1.bf16.msra.mxu0 0
        %902 = vmatprep.subr.bf16.mxu0 0
        %903 = vmatpush1.bf16.msra.mxu0 0
        %904 = vmatprep.subr.bf16.mxu0 0
        %905 = vmatpush1.bf16.msra.mxu0 0
        %906 = vmatprep.mubr.bf16.mxu0 0
        %907 = vmatmul.mubr.bf16.gmra.mrb[0].mxu0 %v848
        %v908 = vpop.f32.mrb[0].mxu0
        %v909 = vadd.f32 0.0, %v908
        %v910 = vpop.f32.mrb[0].mxu0
        %v911 = vpop.f32.mrb[0].mxu0
        %v912 = vadd.f32 0.0, %v911
        %v913 = vpop.f32.mrb[0].mxu0
        %914 = vmatprep.mubr.bf16.mxu0 0
        %915 = vmatmul.mubr.bf16.gmra.mrb[0].mxu0 %v851
        %v916 = vpop.f32.mrb[0].mxu0
        %v917 = vadd.f32 0.0, %v916
        %v918 = vpop.f32.mrb[0].mxu0
        %v919 = vpop.f32.mrb[0].mxu0
        %v920 = vadd.f32 0.0, %v919
        %v921 = vpop.f32.mrb[0].mxu0
        %922 = vmatprep.mubr.bf16.mxu0 0
        %923 = vmatmul.mubr.bf16.gmra.mrb[0].mxu0 %v854
        %v924 = vpop.f32.mrb[0].mxu0
        %v925 = vadd.f32 0.0, %v924
        %v926 = vpop.f32.mrb[0].mxu0
        %v927 = vpop.f32.mrb[0].mxu0
        %v928 = vadd.f32 0.0, %v927
        %v929 = vpop.f32.mrb[0].mxu0
        %930 = vmatprep.mubr.bf16.mxu0 0
        %931 = vmatmul.mubr.bf16.gmra.mrb[0].mxu0 %v857
        %v932 = vpop.f32.mrb[0].mxu0
        %v933 = vadd.f32 0.0, %v932
        %v934 = vpop.f32.mrb[0].mxu0
        %v935 = vpop.f32.mrb[0].mxu0
        %v936 = vadd.f32 0.0, %v935
        %v937 = vpop.f32.mrb[0].mxu0
        %938 = vmatprep.mubr.bf16.mxu0 0
        %939 = vmatmul.mubr.bf16.gmra.mrb[0].mxu0 %v860
        %v940 = vpop.f32.mrb[0].mxu0
        %v941 = vadd.f32 0.0, %v940
        %v942 = vpop.f32.mrb[0].mxu0
        %v943 = vpop.f32.mrb[0].mxu0
        %v944 = vadd.f32 0.0, %v943
        %v945 = vpop.f32.mrb[0].mxu0
        %946 = vmatprep.mubr.bf16.mxu0 0
        %947 = vmatmul.mubr.bf16.gmra.mrb[0].mxu0 %v863
        %v948 = vpop.f32.mrb[0].mxu0
        %v949 = vadd.f32 0.0, %v948
        %v950 = vpop.f32.mrb[0].mxu0
        %v951 = vpop.f32.mrb[0].mxu0
        %v952 = vadd.f32 0.0, %v951
        %v953 = vpop.f32.mrb[0].mxu0
        %954 = vmatprep.mubr.bf16.mxu0 0
        %955 = vmatmul.mubr.bf16.gmra.mrb[0].mxu0 %v866
        %v956 = vpop.f32.mrb[0].mxu0
        %v957 = vadd.f32 0.0, %v956
        %v958 = vpop.f32.mrb[0].mxu0
        %v959 = vpop.f32.mrb[0].mxu0
        %v960 = vadd.f32 0.0, %v959
        %v961 = vpop.f32.mrb[0].mxu0
        %962 = vmatprep.mubr.bf16.mxu0 0
        %963 = vmatmul.mubr.bf16.gmra.mrb[0].mxu0 %v869
        %v964 = vpop.f32.mrb[0].mxu0
        %v965 = vadd.f32 0.0, %v964
        %v966 = vpop.f32.mrb[0].mxu0
        %v967 = vpop.f32.mrb[0].mxu0
        %v968 = vadd.f32 0.0, %v967
        %v969 = vpop.f32.mrb[0].mxu0
        %970 = vdwg.mxu0
        %v971 = vadd.f32 %v676, %v909
        %v972 = vadd.f32 %v679, %v912
        %v973 = vadd.f32 %v684, %v917
        %v974 = vadd.f32 %v687, %v920
        %v975 = vadd.f32 %v692, %v925
        %v976 = vadd.f32 %v695, %v928
        %v977 = vadd.f32 %v700, %v933
        %v978 = vadd.f32 %v703, %v936
        %v979 = vadd.f32 %v708, %v941
        %v980 = vadd.f32 %v711, %v944
        %v981 = vadd.f32 %v716, %v949
        %v982 = vadd.f32 %v719, %v952
        %v983 = vadd.f32 %v724, %v957
        %v984 = vadd.f32 %v727, %v960
        %v985 = vadd.f32 %v732, %v965
        %v986 = vadd.f32 %v735, %v968
        %s987 = sadd.s32 %s198, 1
        %s988 = smul.u32 %s987, 3
        %s989 = smul.addr %s988, 4
        %s990 = scalar_lea.vmem %s195, %s989
        %v991 = vld [vmem:[%s990] sm:$0xf]
        %v992 = vld [vmem:[%s990 + $0x4] sm:$0xf]
        %v993 = vld [vmem:[%s990 + $0xc] sm:$0xf]
        %v994 = vld [vmem:[%s990 + $0x10] sm:$0xf]
        %v995 = vld [vmem:[%s990 + $0x18] sm:$0xf]
        %v996 = vld [vmem:[%s990 + $0x1c] sm:$0xf]
        %v997 = vld [vmem:[%s990 + $0x24] sm:$0xf]
        %v998 = vld [vmem:[%s990 + $0x28] sm:$0xf]
        %v999 = vld [vmem:[%s990 + $0x30] sm:$0xf]
        %v1000 = vld [vmem:[%s990 + $0x34] sm:$0xf]
        %v1001 = vld [vmem:[%s990 + $0x3c] sm:$0xf]
        %v1002 = vld [vmem:[%s990 + $0x40] sm:$0xf]
        %v1003 = vld [vmem:[%s990 + $0x48] sm:$0xf]
        %v1004 = vld [vmem:[%s990 + $0x4c] sm:$0xf]
        %v1005 = vld [vmem:[%s990 + $0x54] sm:$0xf]
        %v1006 = vld [vmem:[%s990 + $0x58] sm:$0xf]
        %s1007 = scalar_lea.vmem %s1, 6
        %v1008 = vld [vmem:[%s1007] sm:$0x3]
        %v1025 = vunpack.c.l.b16 %v991
        %v1026 = vunpack.c.l.b16 %v992
        %v1027 = vunpack.c.l.b16 %v993
        %v1028 = vunpack.c.l.b16 %v994
        %v1029 = vunpack.c.l.b16 %v995
        %v1030 = vunpack.c.l.b16 %v996
        %v1031 = vunpack.c.l.b16 %v997
        %v1032 = vunpack.c.l.b16 %v998
        %v1033 = vunpack.c.l.b16 %v999
        %v1034 = vunpack.c.l.b16 %v1000
        %v1035 = vunpack.c.l.b16 %v1001
        %v1036 = vunpack.c.l.b16 %v1002
        %v1037 = vunpack.c.l.b16 %v1003
        %v1038 = vunpack.c.l.b16 %v1004
        %v1039 = vunpack.c.l.b16 %v1005
        %v1040 = vunpack.c.l.b16 %v1006
        %v1041 = vpack.c.b16 %v1026, %v1025
        %v1042 = vpack.c.b16 %v1028, %v1027
        %v1043 = vpack.c.b16 %v1030, %v1029
        %v1044 = vpack.c.b16 %v1032, %v1031
        %v1045 = vpack.c.b16 %v1034, %v1033
        %v1046 = vpack.c.b16 %v1036, %v1035
        %v1047 = vpack.c.b16 %v1038, %v1037
        %v1048 = vpack.c.b16 %v1040, %v1039
        %v1050 = vsel %vm448, %v1041, 0
        %v1053 = vsel %vm448, %v1042, 0
        %v1056 = vsel %vm448, %v1043, 0
        %v1059 = vsel %vm448, %v1044, 0
        %v1062 = vsel %vm448, %v1045, 0
        %v1065 = vsel %vm448, %v1046, 0
        %v1068 = vsel %vm448, %v1047, 0
        %v1071 = vsel %vm448, %v1048, 0
        %v1074 = vsel %vm473, %v1008, 0
        %1076 = vmatprep.subr.bf16.mxu0 0
        %1077 = vmatpush1.bf16.msra.mxu0 %v1074
        %1078 = vmatprep.subr.bf16.mxu0 0
        %1079 = vmatpush1.bf16.msra.mxu0 0
        %1080 = vmatprep.subr.bf16.mxu0 0
        %1081 = vmatpush1.bf16.msra.mxu0 0
        %1082 = vmatprep.subr.bf16.mxu0 0
        %1083 = vmatpush1.bf16.msra.mxu0 0
        %1084 = vmatprep.subr.bf16.mxu0 0
        %1085 = vmatpush1.bf16.msra.mxu0 0
        %1086 = vmatprep.subr.bf16.mxu0 0
        %1087 = vmatpush1.bf16.msra.mxu0 0
        %1088 = vmatprep.subr.bf16.mxu0 0
        %1089 = vmatpush1.bf16.msra.mxu0 0
        %1090 = vmatprep.subr.bf16.mxu0 0
        %1091 = vmatpush1.bf16.msra.mxu0 0
        %1092 = vmatprep.subr.bf16.mxu0 0
        %1093 = vmatpush1.bf16.msra.mxu0 0
        %1094 = vmatprep.subr.bf16.mxu0 0
        %1095 = vmatpush1.bf16.msra.mxu0 0
        %1096 = vmatprep.subr.bf16.mxu0 0
        %1097 = vmatpush1.bf16.msra.mxu0 0
        %1098 = vmatprep.subr.bf16.mxu0 0
        %1099 = vmatpush1.bf16.msra.mxu0 0
        %1100 = vmatprep.subr.bf16.mxu0 0
        %1101 = vmatpush1.bf16.msra.mxu0 0
        %1102 = vmatprep.subr.bf16.mxu0 0
        %1103 = vmatpush1.bf16.msra.mxu0 0
        %1104 = vmatprep.subr.bf16.mxu0 0
        %1105 = vmatpush1.bf16.msra.mxu0 0
        %1106 = vmatprep.subr.bf16.mxu0 0
        %1107 = vmatpush1.bf16.msra.mxu0 0
        %1108 = vmatprep.mubr.bf16.mxu0 0
        %1109 = vmatmul.mubr.bf16.gmra.mrb[0].mxu0 %v1050
        %v1110 = vpop.f32.mrb[0].mxu0
        %v1111 = vadd.f32 0.0, %v1110
        %v1112 = vpop.f32.mrb[0].mxu0
        %v1113 = vpop.f32.mrb[0].mxu0
        %v1114 = vadd.f32 0.0, %v1113
        %v1115 = vpop.f32.mrb[0].mxu0
        %1116 = vmatprep.mubr.bf16.mxu0 0
        %1117 = vmatmul.mubr.bf16.gmra.mrb[0].mxu0 %v1053
        %v1118 = vpop.f32.mrb[0].mxu0
        %v1119 = vadd.f32 0.0, %v1118
        %v1120 = vpop.f32.mrb[0].mxu0
        %v1121 = vpop.f32.mrb[0].mxu0
        %v1122 = vadd.f32 0.0, %v1121
        %v1123 = vpop.f32.mrb[0].mxu0
        %1124 = vmatprep.mubr.bf16.mxu0 0
        %1125 = vmatmul.mubr.bf16.gmra.mrb[0].mxu0 %v1056
        %v1126 = vpop.f32.mrb[0].mxu0
        %v1127 = vadd.f32 0.0, %v1126
        %v1128 = vpop.f32.mrb[0].mxu0
        %v1129 = vpop.f32.mrb[0].mxu0
        %v1130 = vadd.f32 0.0, %v1129
        %v1131 = vpop.f32.mrb[0].mxu0
        %1132 = vmatprep.mubr.bf16.mxu0 0
        %1133 = vmatmul.mubr.bf16.gmra.mrb[0].mxu0 %v1059
        %v1134 = vpop.f32.mrb[0].mxu0
        %v1135 = vadd.f32 0.0, %v1134
        %v1136 = vpop.f32.mrb[0].mxu0
        %v1137 = vpop.f32.mrb[0].mxu0
        %v1138 = vadd.f32 0.0, %v1137
        %v1139 = vpop.f32.mrb[0].mxu0
        %1140 = vmatprep.mubr.bf16.mxu0 0
        %1141 = vmatmul.mubr.bf16.gmra.mrb[0].mxu0 %v1062
        %v1142 = vpop.f32.mrb[0].mxu0
        %v1143 = vadd.f32 0.0, %v1142
        %v1144 = vpop.f32.mrb[0].mxu0
        %v1145 = vpop.f32.mrb[0].mxu0
        %v1146 = vadd.f32 0.0, %v1145
        %v1147 = vpop.f32.mrb[0].mxu0
        %1148 = vmatprep.mubr.bf16.mxu0 0
        %1149 = vmatmul.mubr.bf16.gmra.mrb[0].mxu0 %v1065
        %v1150 = vpop.f32.mrb[0].mxu0
        %v1151 = vadd.f32 0.0, %v1150
        %v1152 = vpop.f32.mrb[0].mxu0
        %v1153 = vpop.f32.mrb[0].mxu0
        %v1154 = vadd.f32 0.0, %v1153
        %v1155 = vpop.f32.mrb[0].mxu0
        %1156 = vmatprep.mubr.bf16.mxu0 0
        %1157 = vmatmul.mubr.bf16.gmra.mrb[0].mxu0 %v1068
        %v1158 = vpop.f32.mrb[0].mxu0
        %v1159 = vadd.f32 0.0, %v1158
        %v1160 = vpop.f32.mrb[0].mxu0
        %v1161 = vpop.f32.mrb[0].mxu0
        %v1162 = vadd.f32 0.0, %v1161
        %v1163 = vpop.f32.mrb[0].mxu0
        %1164 = vmatprep.mubr.bf16.mxu0 0
        %1165 = vmatmul.mubr.bf16.gmra.mrb[0].mxu0 %v1071
        %v1166 = vpop.f32.mrb[0].mxu0
        %v1167 = vadd.f32 0.0, %v1166
        %v1168 = vpop.f32.mrb[0].mxu0
        %v1169 = vpop.f32.mrb[0].mxu0
        %v1170 = vadd.f32 0.0, %v1169
        %v1171 = vpop.f32.mrb[0].mxu0
        %1172 = vdwg.mxu0
        %v1173 = vadd.f32 %v971, %v1111
        %v1174 = vadd.f32 %v972, %v1114
        %v1175 = vadd.f32 %v973, %v1119
        %v1176 = vadd.f32 %v974, %v1122
        %v1177 = vadd.f32 %v975, %v1127
        %v1178 = vadd.f32 %v976, %v1130
        %v1179 = vadd.f32 %v977, %v1135
        %v1180 = vadd.f32 %v978, %v1138
        %v1181 = vadd.f32 %v979, %v1143
        %v1182 = vadd.f32 %v980, %v1146
        %v1183 = vadd.f32 %v981, %v1151
        %v1184 = vadd.f32 %v982, %v1154
        %v1185 = vadd.f32 %v983, %v1159
        %v1186 = vadd.f32 %v984, %v1162
        %v1187 = vadd.f32 %v985, %v1167
        %v1188 = vadd.f32 %v986, %v1170
        %v1189 = vld [vmem:[%s990] sm:$0xf]
        %v1190 = vld [vmem:[%s990 + $0x4] sm:$0xf]
        %v1191 = vld [vmem:[%s990 + $0x8] sm:$0x1]
        %v1192 = vld [vmem:[%s990 + $0xc] sm:$0xf]
        %v1193 = vld [vmem:[%s990 + $0x10] sm:$0xf]
        %v1194 = vld [vmem:[%s990 + $0x14] sm:$0x1]
        %v1195 = vld [vmem:[%s990 + $0x18] sm:$0xf]
        %v1196 = vld [vmem:[%s990 + $0x1c] sm:$0xf]
        %v1197 = vld [vmem:[%s990 + $0x20] sm:$0x1]
        %v1198 = vld [vmem:[%s990 + $0x24] sm:$0xf]
        %v1199 = vld [vmem:[%s990 + $0x28] sm:$0xf]
        %v1200 = vld [vmem:[%s990 + $0x2c] sm:$0x1]
        %v1201 = vld [vmem:[%s990 + $0x30] sm:$0xf]
        %v1202 = vld [vmem:[%s990 + $0x34] sm:$0xf]
        %v1203 = vld [vmem:[%s990 + $0x38] sm:$0x1]
        %v1204 = vld [vmem:[%s990 + $0x3c] sm:$0xf]
        %v1205 = vld [vmem:[%s990 + $0x40] sm:$0xf]
        %v1206 = vld [vmem:[%s990 + $0x44] sm:$0x1]
        %v1207 = vld [vmem:[%s990 + $0x48] sm:$0xf]
        %v1208 = vld [vmem:[%s990 + $0x4c] sm:$0xf]
        %v1209 = vld [vmem:[%s990 + $0x50] sm:$0x1]
        %v1210 = vld [vmem:[%s990 + $0x54] sm:$0xf]
        %v1211 = vld [vmem:[%s990 + $0x58] sm:$0xf]
        %v1212 = vld [vmem:[%s990 + $0x5c] sm:$0x1]
        %v1214 = vshrl.u32 %v1189, 16
        %v1216 = vrot.slane %v1214, 4
        %v1217 = vshll.u32 %v1189, 16
        %v1219 = vrot.slane %v1217, 5
        %v1220 = vor.u32 %v1216, %v1219
        %v1221 = vrot.slane %v1220, 4
        %v1223 = vshll.u32 %v1190, 16
        %v1225 = vrot.slane %v1223, 5
        %v1226 = vsel %vm229, %v1221, %v1225
        %v1227 = vshrl.u32 %v1190, 16
        %v1229 = vrot.slane %v1227, 4
        %v1230 = vor.u32 %v1229, %v1225
        %v1231 = vrot.slane %v1230, 4
        %v1233 = vshll.u32 %v1191, 16
        %v1235 = vrot.slane %v1233, 5
        %v1236 = vsel %vm229, %v1231, %v1235
        %v1238 = vshrl.u32 %v1192, 16
        %v1240 = vrot.slane %v1238, 4
        %v1241 = vshll.u32 %v1192, 16
        %v1243 = vrot.slane %v1241, 5
        %v1244 = vor.u32 %v1240, %v1243
        %v1245 = vrot.slane %v1244, 4
        %v1247 = vshll.u32 %v1193, 16
        %v1249 = vrot.slane %v1247, 5
        %v1250 = vsel %vm229, %v1245, %v1249
        %v1251 = vshrl.u32 %v1193, 16
        %v1253 = vrot.slane %v1251, 4
        %v1254 = vor.u32 %v1253, %v1249
        %v1255 = vrot.slane %v1254, 4
        %v1257 = vshll.u32 %v1194, 16
        %v1259 = vrot.slane %v1257, 5
        %v1260 = vsel %vm229, %v1255, %v1259
        %v1262 = vshrl.u32 %v1195, 16
        %v1264 = vrot.slane %v1262, 4
        %v1265 = vshll.u32 %v1195, 16
        %v1267 = vrot.slane %v1265, 5
        %v1268 = vor.u32 %v1264, %v1267
        %v1269 = vrot.slane %v1268, 4
        %v1271 = vshll.u32 %v1196, 16
        %v1273 = vrot.slane %v1271, 5
        %v1274 = vsel %vm229, %v1269, %v1273
        %v1275 = vshrl.u32 %v1196, 16
        %v1277 = vrot.slane %v1275, 4
        %v1278 = vor.u32 %v1277, %v1273
        %v1279 = vrot.slane %v1278, 4
        %v1281 = vshll.u32 %v1197, 16
        %v1283 = vrot.slane %v1281, 5
        %v1284 = vsel %vm229, %v1279, %v1283
        %v1286 = vshrl.u32 %v1198, 16
        %v1288 = vrot.slane %v1286, 4
        %v1289 = vshll.u32 %v1198, 16
        %v1291 = vrot.slane %v1289, 5
        %v1292 = vor.u32 %v1288, %v1291
        %v1293 = vrot.slane %v1292, 4
        %v1295 = vshll.u32 %v1199, 16
        %v1297 = vrot.slane %v1295, 5
        %v1298 = vsel %vm229, %v1293, %v1297
        %v1299 = vshrl.u32 %v1199, 16
        %v1301 = vrot.slane %v1299, 4
        %v1302 = vor.u32 %v1301, %v1297
        %v1303 = vrot.slane %v1302, 4
        %v1305 = vshll.u32 %v1200, 16
        %v1307 = vrot.slane %v1305, 5
        %v1308 = vsel %vm229, %v1303, %v1307
        %v1310 = vshrl.u32 %v1201, 16
        %v1312 = vrot.slane %v1310, 4
        %v1313 = vshll.u32 %v1201, 16
        %v1315 = vrot.slane %v1313, 5
        %v1316 = vor.u32 %v1312, %v1315
        %v1317 = vrot.slane %v1316, 4
        %v1319 = vshll.u32 %v1202, 16
        %v1321 = vrot.slane %v1319, 5
        %v1322 = vsel %vm229, %v1317, %v1321
        %v1323 = vshrl.u32 %v1202, 16
        %v1325 = vrot.slane %v1323, 4
        %v1326 = vor.u32 %v1325, %v1321
        %v1327 = vrot.slane %v1326, 4
        %v1329 = vshll.u32 %v1203, 16
        %v1331 = vrot.slane %v1329, 5
        %v1332 = vsel %vm229, %v1327, %v1331
        %v1334 = vshrl.u32 %v1204, 16
        %v1336 = vrot.slane %v1334, 4
        %v1337 = vshll.u32 %v1204, 16
        %v1339 = vrot.slane %v1337, 5
        %v1340 = vor.u32 %v1336, %v1339
        %v1341 = vrot.slane %v1340, 4
        %v1343 = vshll.u32 %v1205, 16
        %v1345 = vrot.slane %v1343, 5
        %v1346 = vsel %vm229, %v1341, %v1345
        %v1347 = vshrl.u32 %v1205, 16
        %v1349 = vrot.slane %v1347, 4
        %v1350 = vor.u32 %v1349, %v1345
        %v1351 = vrot.slane %v1350, 4
        %v1353 = vshll.u32 %v1206, 16
        %v1355 = vrot.slane %v1353, 5
        %v1356 = vsel %vm229, %v1351, %v1355
        %v1358 = vshrl.u32 %v1207, 16
        %v1360 = vrot.slane %v1358, 4
        %v1361 = vshll.u32 %v1207, 16
        %v1363 = vrot.slane %v1361, 5
        %v1364 = vor.u32 %v1360, %v1363
        %v1365 = vrot.slane %v1364, 4
        %v1367 = vshll.u32 %v1208, 16
        %v1369 = vrot.slane %v1367, 5
        %v1370 = vsel %vm229, %v1365, %v1369
        %v1371 = vshrl.u32 %v1208, 16
        %v1373 = vrot.slane %v1371, 4
        %v1374 = vor.u32 %v1373, %v1369
        %v1375 = vrot.slane %v1374, 4
        %v1377 = vshll.u32 %v1209, 16
        %v1379 = vrot.slane %v1377, 5
        %v1380 = vsel %vm229, %v1375, %v1379
        %v1382 = vshrl.u32 %v1210, 16
        %v1384 = vrot.slane %v1382, 4
        %v1385 = vshll.u32 %v1210, 16
        %v1387 = vrot.slane %v1385, 5
        %v1388 = vor.u32 %v1384, %v1387
        %v1389 = vrot.slane %v1388, 4
        %v1391 = vshll.u32 %v1211, 16
        %v1393 = vrot.slane %v1391, 5
        %v1394 = vsel %vm229, %v1389, %v1393
        %v1395 = vshrl.u32 %v1211, 16
        %v1397 = vrot.slane %v1395, 4
        %v1398 = vor.u32 %v1397, %v1393
        %v1399 = vrot.slane %v1398, 4
        %v1401 = vshll.u32 %v1212, 16
        %v1403 = vrot.slane %v1401, 5
        %v1404 = vsel %vm229, %v1399, %v1403
        %s1405 = scalar_lea.vmem %s1, 8
        %v1406 = vld [vmem:[%s1405] sm:$0x3]
        %v1407 = vunpack.c.l.b16 %v1226
        %v1408 = vunpack.c.l.b16 %v1236
        %v1409 = vunpack.c.l.b16 %v1250
        %v1410 = vunpack.c.l.b16 %v1260
        %v1411 = vunpack.c.l.b16 %v1274
        %v1412 = vunpack.c.l.b16 %v1284
        %v1413 = vunpack.c.l.b16 %v1298
        %v1414 = vunpack.c.l.b16 %v1308
        %v1415 = vunpack.c.l.b16 %v1322
        %v1416 = vunpack.c.l.b16 %v1332
        %v1417 = vunpack.c.l.b16 %v1346
        %v1418 = vunpack.c.l.b16 %v1356
        %v1419 = vunpack.c.l.b16 %v1370
        %v1420 = vunpack.c.l.b16 %v1380
        %v1421 = vunpack.c.l.b16 %v1394
        %v1422 = vunpack.c.l.b16 %v1404
        %v1423 = vpack.c.b16 %v1408, %v1407
        %v1424 = vpack.c.b16 %v1410, %v1409
        %v1425 = vpack.c.b16 %v1412, %v1411
        %v1426 = vpack.c.b16 %v1414, %v1413
        %v1427 = vpack.c.b16 %v1416, %v1415
        %v1428 = vpack.c.b16 %v1418, %v1417
        %v1429 = vpack.c.b16 %v1420, %v1419
        %v1430 = vpack.c.b16 %v1422, %v1421
        %v1432 = vsel %vm448, %v1423, 0
        %v1435 = vsel %vm448, %v1424, 0
        %v1438 = vsel %vm448, %v1425, 0
        %v1441 = vsel %vm448, %v1426, 0
        %v1444 = vsel %vm448, %v1427, 0
        %v1447 = vsel %vm448, %v1428, 0
        %v1450 = vsel %vm448, %v1429, 0
        %v1453 = vsel %vm448, %v1430, 0
        %v1456 = vsel %vm473, %v1406, 0
        %1458 = vmatprep.subr.bf16.mxu0 0
        %1459 = vmatpush1.bf16.msra.mxu0 %v1456
        %1460 = vmatprep.subr.bf16.mxu0 0
        %1461 = vmatpush1.bf16.msra.mxu0 0
        %1462 = vmatprep.subr.bf16.mxu0 0
        %1463 = vmatpush1.bf16.msra.mxu0 0
        %1464 = vmatprep.subr.bf16.mxu0 0
        %1465 = vmatpush1.bf16.msra.mxu0 0
        %1466 = vmatprep.subr.bf16.mxu0 0
        %1467 = vmatpush1.bf16.msra.mxu0 0
        %1468 = vmatprep.subr.bf16.mxu0 0
        %1469 = vmatpush1.bf16.msra.mxu0 0
        %1470 = vmatprep.subr.bf16.mxu0 0
        %1471 = vmatpush1.bf16.msra.mxu0 0
        %1472 = vmatprep.subr.bf16.mxu0 0
        %1473 = vmatpush1.bf16.msra.mxu0 0
        %1474 = vmatprep.subr.bf16.mxu0 0
        %1475 = vmatpush1.bf16.msra.mxu0 0
        %1476 = vmatprep.subr.bf16.mxu0 0
        %1477 = vmatpush1.bf16.msra.mxu0 0
        %1478 = vmatprep.subr.bf16.mxu0 0
        %1479 = vmatpush1.bf16.msra.mxu0 0
        %1480 = vmatprep.subr.bf16.mxu0 0
        %1481 = vmatpush1.bf16.msra.mxu0 0
        %1482 = vmatprep.subr.bf16.mxu0 0
        %1483 = vmatpush1.bf16.msra.mxu0 0
        %1484 = vmatprep.subr.bf16.mxu0 0
        %1485 = vmatpush1.bf16.msra.mxu0 0
        %1486 = vmatprep.subr.bf16.mxu0 0
        %1487 = vmatpush1.bf16.msra.mxu0 0
        %1488 = vmatprep.subr.bf16.mxu0 0
        %1489 = vmatpush1.bf16.msra.mxu0 0
        %1490 = vmatprep.mubr.bf16.mxu0 0
        %1491 = vmatmul.mubr.bf16.gmra.mrb[0].mxu0 %v1432
        %v1492 = vpop.f32.mrb[0].mxu0
        %v1493 = vadd.f32 0.0, %v1492
        %v1494 = vpop.f32.mrb[0].mxu0
        %v1495 = vpop.f32.mrb[0].mxu0
        %v1496 = vadd.f32 0.0, %v1495
        %v1497 = vpop.f32.mrb[0].mxu0
        %1498 = vmatprep.mubr.bf16.mxu0 0
        %1499 = vmatmul.mubr.bf16.gmra.mrb[0].mxu0 %v1435
        %v1500 = vpop.f32.mrb[0].mxu0
        %v1501 = vadd.f32 0.0, %v1500
        %v1502 = vpop.f32.mrb[0].mxu0
        %v1503 = vpop.f32.mrb[0].mxu0
        %v1504 = vadd.f32 0.0, %v1503
        %v1505 = vpop.f32.mrb[0].mxu0
        %1506 = vmatprep.mubr.bf16.mxu0 0
        %1507 = vmatmul.mubr.bf16.gmra.mrb[0].mxu0 %v1438
        %v1508 = vpop.f32.mrb[0].mxu0
        %v1509 = vadd.f32 0.0, %v1508
        %v1510 = vpop.f32.mrb[0].mxu0
        %v1511 = vpop.f32.mrb[0].mxu0
        %v1512 = vadd.f32 0.0, %v1511
        %v1513 = vpop.f32.mrb[0].mxu0
        %1514 = vmatprep.mubr.bf16.mxu0 0
        %1515 = vmatmul.mubr.bf16.gmra.mrb[0].mxu0 %v1441
        %v1516 = vpop.f32.mrb[0].mxu0
        %v1517 = vadd.f32 0.0, %v1516
        %v1518 = vpop.f32.mrb[0].mxu0
        %v1519 = vpop.f32.mrb[0].mxu0
        %v1520 = vadd.f32 0.0, %v1519
        %v1521 = vpop.f32.mrb[0].mxu0
        %1522 = vmatprep.mubr.bf16.mxu0 0
        %1523 = vmatmul.mubr.bf16.gmra.mrb[0].mxu0 %v1444
        %v1524 = vpop.f32.mrb[0].mxu0
        %v1525 = vadd.f32 0.0, %v1524
        %v1526 = vpop.f32.mrb[0].mxu0
        %v1527 = vpop.f32.mrb[0].mxu0
        %v1528 = vadd.f32 0.0, %v1527
        %v1529 = vpop.f32.mrb[0].mxu0
        %1530 = vmatprep.mubr.bf16.mxu0 0
        %1531 = vmatmul.mubr.bf16.gmra.mrb[0].mxu0 %v1447
        %v1532 = vpop.f32.mrb[0].mxu0
        %v1533 = vadd.f32 0.0, %v1532
        %v1534 = vpop.f32.mrb[0].mxu0
        %v1535 = vpop.f32.mrb[0].mxu0
        %v1536 = vadd.f32 0.0, %v1535
        %v1537 = vpop.f32.mrb[0].mxu0
        %1538 = vmatprep.mubr.bf16.mxu0 0
        %1539 = vmatmul.mubr.bf16.gmra.mrb[0].mxu0 %v1450
        %v1540 = vpop.f32.mrb[0].mxu0
        %v1541 = vadd.f32 0.0, %v1540
        %v1542 = vpop.f32.mrb[0].mxu0
        %v1543 = vpop.f32.mrb[0].mxu0
        %v1544 = vadd.f32 0.0, %v1543
        %v1545 = vpop.f32.mrb[0].mxu0
        %1546 = vmatprep.mubr.bf16.mxu0 0
        %1547 = vmatmul.mubr.bf16.gmra.mrb[0].mxu0 %v1453
        %v1548 = vpop.f32.mrb[0].mxu0
        %v1549 = vadd.f32 0.0, %v1548
        %v1550 = vpop.f32.mrb[0].mxu0
        %v1551 = vpop.f32.mrb[0].mxu0
        %v1552 = vadd.f32 0.0, %v1551
        %v1553 = vpop.f32.mrb[0].mxu0
        %1554 = vdwg.mxu0
        %v1555 = vadd.f32 %v1173, %v1493
        %v1556 = vadd.f32 %v1174, %v1496
        %v1557 = vadd.f32 %v1175, %v1501
        %v1558 = vadd.f32 %v1176, %v1504
        %v1559 = vadd.f32 %v1177, %v1509
        %v1560 = vadd.f32 %v1178, %v1512
        %v1561 = vadd.f32 %v1179, %v1517
        %v1562 = vadd.f32 %v1180, %v1520
        %v1563 = vadd.f32 %v1181, %v1525
        %v1564 = vadd.f32 %v1182, %v1528
        %v1565 = vadd.f32 %v1183, %v1533
        %v1566 = vadd.f32 %v1184, %v1536
        %v1567 = vadd.f32 %v1185, %v1541
        %v1568 = vadd.f32 %v1186, %v1544
        %v1569 = vadd.f32 %v1187, %v1549
        %v1570 = vadd.f32 %v1188, %v1552
        %v1571 = vld [vmem:[%s990] sm:$0xe]
        %v1572 = vld [vmem:[%s990 + $0xc] sm:$0xe]
        %v1573 = vld [vmem:[%s990 + $0x18] sm:$0xe]
        %v1574 = vld [vmem:[%s990 + $0x24] sm:$0xe]
        %v1575 = vld [vmem:[%s990 + $0x30] sm:$0xe]
        %v1576 = vld [vmem:[%s990 + $0x3c] sm:$0xe]
        %v1577 = vld [vmem:[%s990 + $0x48] sm:$0xe]
        %v1578 = vld [vmem:[%s990 + $0x54] sm:$0xe]
        %v1603 = vrot.slane %v1571, 5
        %v1604 = vrot.slane %v1603, 4
        %v1605 = vrot.slane %v1190, 5
        %v1606 = vsel %vm764, %v1604, %v1605
        %v1607 = vrot.slane %v1605, 4
        %v1608 = vrot.slane %v1191, 5
        %v1609 = vsel %vm764, %v1607, %v1608
        %v1610 = vrot.slane %v1572, 5
        %v1611 = vrot.slane %v1610, 4
        %v1612 = vrot.slane %v1193, 5
        %v1613 = vsel %vm764, %v1611, %v1612
        %v1614 = vrot.slane %v1612, 4
        %v1615 = vrot.slane %v1194, 5
        %v1616 = vsel %vm764, %v1614, %v1615
        %v1617 = vrot.slane %v1573, 5
        %v1618 = vrot.slane %v1617, 4
        %v1619 = vrot.slane %v1196, 5
        %v1620 = vsel %vm764, %v1618, %v1619
        %v1621 = vrot.slane %v1619, 4
        %v1622 = vrot.slane %v1197, 5
        %v1623 = vsel %vm764, %v1621, %v1622
        %v1624 = vrot.slane %v1574, 5
        %v1625 = vrot.slane %v1624, 4
        %v1626 = vrot.slane %v1199, 5
        %v1627 = vsel %vm764, %v1625, %v1626
        %v1628 = vrot.slane %v1626, 4
        %v1629 = vrot.slane %v1200, 5
        %v1630 = vsel %vm764, %v1628, %v1629
        %v1631 = vrot.slane %v1575, 5
        %v1632 = vrot.slane %v1631, 4
        %v1633 = vrot.slane %v1202, 5
        %v1634 = vsel %vm764, %v1632, %v1633
        %v1635 = vrot.slane %v1633, 4
        %v1636 = vrot.slane %v1203, 5
        %v1637 = vsel %vm764, %v1635, %v1636
        %v1638 = vrot.slane %v1576, 5
        %v1639 = vrot.slane %v1638, 4
        %v1640 = vrot.slane %v1205, 5
        %v1641 = vsel %vm764, %v1639, %v1640
        %v1642 = vrot.slane %v1640, 4
        %v1643 = vrot.slane %v1206, 5
        %v1644 = vsel %vm764, %v1642, %v1643
        %v1645 = vrot.slane %v1577, 5
        %v1646 = vrot.slane %v1645, 4
        %v1647 = vrot.slane %v1208, 5
        %v1648 = vsel %vm764, %v1646, %v1647
        %v1649 = vrot.slane %v1647, 4
        %v1650 = vrot.slane %v1209, 5
        %v1651 = vsel %vm764, %v1649, %v1650
        %v1652 = vrot.slane %v1578, 5
        %v1653 = vrot.slane %v1652, 4
        %v1654 = vrot.slane %v1211, 5
        %v1655 = vsel %vm764, %v1653, %v1654
        %v1656 = vrot.slane %v1654, 4
        %v1657 = vrot.slane %v1212, 5
        %v1658 = vsel %vm764, %v1656, %v1657
        %s1659 = scalar_lea.vmem %s1, 10
        %v1660 = vld [vmem:[%s1659] sm:$0x3]
        %v1661 = vunpack.c.l.b16 %v1606
        %v1662 = vunpack.c.l.b16 %v1609
        %v1663 = vunpack.c.l.b16 %v1613
        %v1664 = vunpack.c.l.b16 %v1616
        %v1665 = vunpack.c.l.b16 %v1620
        %v1666 = vunpack.c.l.b16 %v1623
        %v1667 = vunpack.c.l.b16 %v1627
        %v1668 = vunpack.c.l.b16 %v1630
        %v1669 = vunpack.c.l.b16 %v1634
        %v1670 = vunpack.c.l.b16 %v1637
        %v1671 = vunpack.c.l.b16 %v1641
        %v1672 = vunpack.c.l.b16 %v1644
        %v1673 = vunpack.c.l.b16 %v1648
        %v1674 = vunpack.c.l.b16 %v1651
        %v1675 = vunpack.c.l.b16 %v1655
        %v1676 = vunpack.c.l.b16 %v1658
        %v1677 = vpack.c.b16 %v1662, %v1661
        %v1678 = vpack.c.b16 %v1664, %v1663
        %v1679 = vpack.c.b16 %v1666, %v1665
        %v1680 = vpack.c.b16 %v1668, %v1667
        %v1681 = vpack.c.b16 %v1670, %v1669
        %v1682 = vpack.c.b16 %v1672, %v1671
        %v1683 = vpack.c.b16 %v1674, %v1673
        %v1684 = vpack.c.b16 %v1676, %v1675
        %v1686 = vsel %vm448, %v1677, 0
        %v1689 = vsel %vm448, %v1678, 0
        %v1692 = vsel %vm448, %v1679, 0
        %v1695 = vsel %vm448, %v1680, 0
        %v1698 = vsel %vm448, %v1681, 0
        %v1701 = vsel %vm448, %v1682, 0
        %v1704 = vsel %vm448, %v1683, 0
        %v1707 = vsel %vm448, %v1684, 0
        %v1710 = vsel %vm473, %v1660, 0
        %1712 = vmatprep.subr.bf16.mxu0 0
        %1713 = vmatpush1.bf16.msra.mxu0 %v1710
        %1714 = vmatprep.subr.bf16.mxu0 0
        %1715 = vmatpush1.bf16.msra.mxu0 0
        %1716 = vmatprep.subr.bf16.mxu0 0
        %1717 = vmatpush1.bf16.msra.mxu0 0
        %1718 = vmatprep.subr.bf16.mxu0 0
        %1719 = vmatpush1.bf16.msra.mxu0 0
        %1720 = vmatprep.subr.bf16.mxu0 0
        %1721 = vmatpush1.bf16.msra.mxu0 0
        %1722 = vmatprep.subr.bf16.mxu0 0
        %1723 = vmatpush1.bf16.msra.mxu0 0
        %1724 = vmatprep.subr.bf16.mxu0 0
        %1725 = vmatpush1.bf16.msra.mxu0 0
        %1726 = vmatprep.subr.bf16.mxu0 0
        %1727 = vmatpush1.bf16.msra.mxu0 0
        %1728 = vmatprep.subr.bf16.mxu0 0
        %1729 = vmatpush1.bf16.msra.mxu0 0
        %1730 = vmatprep.subr.bf16.mxu0 0
        %1731 = vmatpush1.bf16.msra.mxu0 0
        %1732 = vmatprep.subr.bf16.mxu0 0
        %1733 = vmatpush1.bf16.msra.mxu0 0
        %1734 = vmatprep.subr.bf16.mxu0 0
        %1735 = vmatpush1.bf16.msra.mxu0 0
        %1736 = vmatprep.subr.bf16.mxu0 0
        %1737 = vmatpush1.bf16.msra.mxu0 0
        %1738 = vmatprep.subr.bf16.mxu0 0
        %1739 = vmatpush1.bf16.msra.mxu0 0
        %1740 = vmatprep.subr.bf16.mxu0 0
        %1741 = vmatpush1.bf16.msra.mxu0 0
        %1742 = vmatprep.subr.bf16.mxu0 0
        %1743 = vmatpush1.bf16.msra.mxu0 0
        %1744 = vmatprep.mubr.bf16.mxu0 0
        %1745 = vmatmul.mubr.bf16.gmra.mrb[0].mxu0 %v1686
        %v1746 = vpop.f32.mrb[0].mxu0
        %v1747 = vadd.f32 0.0, %v1746
        %v1748 = vpop.f32.mrb[0].mxu0
        %v1749 = vpop.f32.mrb[0].mxu0
        %v1750 = vadd.f32 0.0, %v1749
        %v1751 = vpop.f32.mrb[0].mxu0
        %1752 = vmatprep.mubr.bf16.mxu0 0
        %1753 = vmatmul.mubr.bf16.gmra.mrb[0].mxu0 %v1689
        %v1754 = vpop.f32.mrb[0].mxu0
        %v1755 = vadd.f32 0.0, %v1754
        %v1756 = vpop.f32.mrb[0].mxu0
        %v1757 = vpop.f32.mrb[0].mxu0
        %v1758 = vadd.f32 0.0, %v1757
        %v1759 = vpop.f32.mrb[0].mxu0
        %1760 = vmatprep.mubr.bf16.mxu0 0
        %1761 = vmatmul.mubr.bf16.gmra.mrb[0].mxu0 %v1692
        %v1762 = vpop.f32.mrb[0].mxu0
        %v1763 = vadd.f32 0.0, %v1762
        %v1764 = vpop.f32.mrb[0].mxu0
        %v1765 = vpop.f32.mrb[0].mxu0
        %v1766 = vadd.f32 0.0, %v1765
        %v1767 = vpop.f32.mrb[0].mxu0
        %1768 = vmatprep.mubr.bf16.mxu0 0
        %1769 = vmatmul.mubr.bf16.gmra.mrb[0].mxu0 %v1695
        %v1770 = vpop.f32.mrb[0].mxu0
        %v1771 = vadd.f32 0.0, %v1770
        %v1772 = vpop.f32.mrb[0].mxu0
        %v1773 = vpop.f32.mrb[0].mxu0
        %v1774 = vadd.f32 0.0, %v1773
        %v1775 = vpop.f32.mrb[0].mxu0
        %1776 = vmatprep.mubr.bf16.mxu0 0
        %1777 = vmatmul.mubr.bf16.gmra.mrb[0].mxu0 %v1698
        %v1778 = vpop.f32.mrb[0].mxu0
        %v1779 = vadd.f32 0.0, %v1778
        %v1780 = vpop.f32.mrb[0].mxu0
        %v1781 = vpop.f32.mrb[0].mxu0
        %v1782 = vadd.f32 0.0, %v1781
        %v1783 = vpop.f32.mrb[0].mxu0
        %1784 = vmatprep.mubr.bf16.mxu0 0
        %1785 = vmatmul.mubr.bf16.gmra.mrb[0].mxu0 %v1701
        %v1786 = vpop.f32.mrb[0].mxu0
        %v1787 = vadd.f32 0.0, %v1786
        %v1788 = vpop.f32.mrb[0].mxu0
        %v1789 = vpop.f32.mrb[0].mxu0
        %v1790 = vadd.f32 0.0, %v1789
        %v1791 = vpop.f32.mrb[0].mxu0
        %1792 = vmatprep.mubr.bf16.mxu0 0
        %1793 = vmatmul.mubr.bf16.gmra.mrb[0].mxu0 %v1704
        %v1794 = vpop.f32.mrb[0].mxu0
        %v1795 = vadd.f32 0.0, %v1794
        %v1796 = vpop.f32.mrb[0].mxu0
        %v1797 = vpop.f32.mrb[0].mxu0
        %v1798 = vadd.f32 0.0, %v1797
        %v1799 = vpop.f32.mrb[0].mxu0
        %1800 = vmatprep.mubr.bf16.mxu0 0
        %1801 = vmatmul.mubr.bf16.gmra.mrb[0].mxu0 %v1707
        %v1802 = vpop.f32.mrb[0].mxu0
        %v1803 = vadd.f32 0.0, %v1802
        %v1804 = vpop.f32.mrb[0].mxu0
        %v1805 = vpop.f32.mrb[0].mxu0
        %v1806 = vadd.f32 0.0, %v1805
        %v1807 = vpop.f32.mrb[0].mxu0
        %1808 = vdwg.mxu0
        %v1809 = vadd.f32 %v1555, %v1747
        %v1810 = vadd.f32 %v1556, %v1750
        %v1811 = vadd.f32 %v1557, %v1755
        %v1812 = vadd.f32 %v1558, %v1758
        %v1813 = vadd.f32 %v1559, %v1763
        %v1814 = vadd.f32 %v1560, %v1766
        %v1815 = vadd.f32 %v1561, %v1771
        %v1816 = vadd.f32 %v1562, %v1774
        %v1817 = vadd.f32 %v1563, %v1779
        %v1818 = vadd.f32 %v1564, %v1782
        %v1819 = vadd.f32 %v1565, %v1787
        %v1820 = vadd.f32 %v1566, %v1790
        %v1821 = vadd.f32 %v1567, %v1795
        %v1822 = vadd.f32 %v1568, %v1798
        %v1823 = vadd.f32 %v1569, %v1803
        %v1824 = vadd.f32 %v1570, %v1806
        %s1825 = sadd.s32 %s198, 2
        %s1826 = smul.u32 %s1825, 3
        %s1827 = smul.addr %s1826, 4
        %s1828 = scalar_lea.vmem %s195, %s1827
        %v1829 = vld [vmem:[%s1828] sm:$0xf]
        %v1830 = vld [vmem:[%s1828 + $0x4] sm:$0xf]
        %v1831 = vld [vmem:[%s1828 + $0xc] sm:$0xf]
        %v1832 = vld [vmem:[%s1828 + $0x10] sm:$0xf]
        %v1833 = vld [vmem:[%s1828 + $0x18] sm:$0xf]
        %v1834 = vld [vmem:[%s1828 + $0x1c] sm:$0xf]
        %v1835 = vld [vmem:[%s1828 + $0x24] sm:$0xf]
        %v1836 = vld [vmem:[%s1828 + $0x28] sm:$0xf]
        %v1837 = vld [vmem:[%s1828 + $0x30] sm:$0xf]
        %v1838 = vld [vmem:[%s1828 + $0x34] sm:$0xf]
        %v1839 = vld [vmem:[%s1828 + $0x3c] sm:$0xf]
        %v1840 = vld [vmem:[%s1828 + $0x40] sm:$0xf]
        %v1841 = vld [vmem:[%s1828 + $0x48] sm:$0xf]
        %v1842 = vld [vmem:[%s1828 + $0x4c] sm:$0xf]
        %v1843 = vld [vmem:[%s1828 + $0x54] sm:$0xf]
        %v1844 = vld [vmem:[%s1828 + $0x58] sm:$0xf]
        %s1845 = scalar_lea.vmem %s1, 12
        %v1846 = vld [vmem:[%s1845] sm:$0x3]
        %v1863 = vunpack.c.l.b16 %v1829
        %v1864 = vunpack.c.l.b16 %v1830
        %v1865 = vunpack.c.l.b16 %v1831
        %v1866 = vunpack.c.l.b16 %v1832
        %v1867 = vunpack.c.l.b16 %v1833
        %v1868 = vunpack.c.l.b16 %v1834
        %v1869 = vunpack.c.l.b16 %v1835
        %v1870 = vunpack.c.l.b16 %v1836
        %v1871 = vunpack.c.l.b16 %v1837
        %v1872 = vunpack.c.l.b16 %v1838
        %v1873 = vunpack.c.l.b16 %v1839
        %v1874 = vunpack.c.l.b16 %v1840
        %v1875 = vunpack.c.l.b16 %v1841
        %v1876 = vunpack.c.l.b16 %v1842
        %v1877 = vunpack.c.l.b16 %v1843
        %v1878 = vunpack.c.l.b16 %v1844
        %v1879 = vpack.c.b16 %v1864, %v1863
        %v1880 = vpack.c.b16 %v1866, %v1865
        %v1881 = vpack.c.b16 %v1868, %v1867
        %v1882 = vpack.c.b16 %v1870, %v1869
        %v1883 = vpack.c.b16 %v1872, %v1871
        %v1884 = vpack.c.b16 %v1874, %v1873
        %v1885 = vpack.c.b16 %v1876, %v1875
        %v1886 = vpack.c.b16 %v1878, %v1877
        %v1888 = vsel %vm448, %v1879, 0
        %v1891 = vsel %vm448, %v1880, 0
        %v1894 = vsel %vm448, %v1881, 0
        %v1897 = vsel %vm448, %v1882, 0
        %v1900 = vsel %vm448, %v1883, 0
        %v1903 = vsel %vm448, %v1884, 0
        %v1906 = vsel %vm448, %v1885, 0
        %v1909 = vsel %vm448, %v1886, 0
        %v1912 = vsel %vm473, %v1846, 0
        %1914 = vmatprep.subr.bf16.mxu0 0
        %1915 = vmatpush1.bf16.msra.mxu0 %v1912
        %1916 = vmatprep.subr.bf16.mxu0 0
        %1917 = vmatpush1.bf16.msra.mxu0 0
        %1918 = vmatprep.subr.bf16.mxu0 0
        %1919 = vmatpush1.bf16.msra.mxu0 0
        %1920 = vmatprep.subr.bf16.mxu0 0
        %1921 = vmatpush1.bf16.msra.mxu0 0
        %1922 = vmatprep.subr.bf16.mxu0 0
        %1923 = vmatpush1.bf16.msra.mxu0 0
        %1924 = vmatprep.subr.bf16.mxu0 0
        %1925 = vmatpush1.bf16.msra.mxu0 0
        %1926 = vmatprep.subr.bf16.mxu0 0
        %1927 = vmatpush1.bf16.msra.mxu0 0
        %1928 = vmatprep.subr.bf16.mxu0 0
        %1929 = vmatpush1.bf16.msra.mxu0 0
        %1930 = vmatprep.subr.bf16.mxu0 0
        %1931 = vmatpush1.bf16.msra.mxu0 0
        %1932 = vmatprep.subr.bf16.mxu0 0
        %1933 = vmatpush1.bf16.msra.mxu0 0
        %1934 = vmatprep.subr.bf16.mxu0 0
        %1935 = vmatpush1.bf16.msra.mxu0 0
        %1936 = vmatprep.subr.bf16.mxu0 0
        %1937 = vmatpush1.bf16.msra.mxu0 0
        %1938 = vmatprep.subr.bf16.mxu0 0
        %1939 = vmatpush1.bf16.msra.mxu0 0
        %1940 = vmatprep.subr.bf16.mxu0 0
        %1941 = vmatpush1.bf16.msra.mxu0 0
        %1942 = vmatprep.subr.bf16.mxu0 0
        %1943 = vmatpush1.bf16.msra.mxu0 0
        %1944 = vmatprep.subr.bf16.mxu0 0
        %1945 = vmatpush1.bf16.msra.mxu0 0
        %1946 = vmatprep.mubr.bf16.mxu0 0
        %1947 = vmatmul.mubr.bf16.gmra.mrb[0].mxu0 %v1888
        %v1948 = vpop.f32.mrb[0].mxu0
        %v1949 = vadd.f32 0.0, %v1948
        %v1950 = vpop.f32.mrb[0].mxu0
        %v1951 = vpop.f32.mrb[0].mxu0
        %v1952 = vadd.f32 0.0, %v1951
        %v1953 = vpop.f32.mrb[0].mxu0
        %1954 = vmatprep.mubr.bf16.mxu0 0
        %1955 = vmatmul.mubr.bf16.gmra.mrb[0].mxu0 %v1891
        %v1956 = vpop.f32.mrb[0].mxu0
        %v1957 = vadd.f32 0.0, %v1956
        %v1958 = vpop.f32.mrb[0].mxu0
        %v1959 = vpop.f32.mrb[0].mxu0
        %v1960 = vadd.f32 0.0, %v1959
        %v1961 = vpop.f32.mrb[0].mxu0
        %1962 = vmatprep.mubr.bf16.mxu0 0
        %1963 = vmatmul.mubr.bf16.gmra.mrb[0].mxu0 %v1894
        %v1964 = vpop.f32.mrb[0].mxu0
        %v1965 = vadd.f32 0.0, %v1964
        %v1966 = vpop.f32.mrb[0].mxu0
        %v1967 = vpop.f32.mrb[0].mxu0
        %v1968 = vadd.f32 0.0, %v1967
        %v1969 = vpop.f32.mrb[0].mxu0
        %1970 = vmatprep.mubr.bf16.mxu0 0
        %1971 = vmatmul.mubr.bf16.gmra.mrb[0].mxu0 %v1897
        %v1972 = vpop.f32.mrb[0].mxu0
        %v1973 = vadd.f32 0.0, %v1972
        %v1974 = vpop.f32.mrb[0].mxu0
        %v1975 = vpop.f32.mrb[0].mxu0
        %v1976 = vadd.f32 0.0, %v1975
        %v1977 = vpop.f32.mrb[0].mxu0
        %1978 = vmatprep.mubr.bf16.mxu0 0
        %1979 = vmatmul.mubr.bf16.gmra.mrb[0].mxu0 %v1900
        %v1980 = vpop.f32.mrb[0].mxu0
        %v1981 = vadd.f32 0.0, %v1980
        %v1982 = vpop.f32.mrb[0].mxu0
        %v1983 = vpop.f32.mrb[0].mxu0
        %v1984 = vadd.f32 0.0, %v1983
        %v1985 = vpop.f32.mrb[0].mxu0
        %1986 = vmatprep.mubr.bf16.mxu0 0
        %1987 = vmatmul.mubr.bf16.gmra.mrb[0].mxu0 %v1903
        %v1988 = vpop.f32.mrb[0].mxu0
        %v1989 = vadd.f32 0.0, %v1988
        %v1990 = vpop.f32.mrb[0].mxu0
        %v1991 = vpop.f32.mrb[0].mxu0
        %v1992 = vadd.f32 0.0, %v1991
        %v1993 = vpop.f32.mrb[0].mxu0
        %1994 = vmatprep.mubr.bf16.mxu0 0
        %1995 = vmatmul.mubr.bf16.gmra.mrb[0].mxu0 %v1906
        %v1996 = vpop.f32.mrb[0].mxu0
        %v1997 = vadd.f32 0.0, %v1996
        %v1998 = vpop.f32.mrb[0].mxu0
        %v1999 = vpop.f32.mrb[0].mxu0
        %v2000 = vadd.f32 0.0, %v1999
        %v2001 = vpop.f32.mrb[0].mxu0
        %2002 = vmatprep.mubr.bf16.mxu0 0
        %2003 = vmatmul.mubr.bf16.gmra.mrb[0].mxu0 %v1909
        %v2004 = vpop.f32.mrb[0].mxu0
        %v2005 = vadd.f32 0.0, %v2004
        %v2006 = vpop.f32.mrb[0].mxu0
        %v2007 = vpop.f32.mrb[0].mxu0
        %v2008 = vadd.f32 0.0, %v2007
        %v2009 = vpop.f32.mrb[0].mxu0
        %2010 = vdwg.mxu0
        %v2011 = vadd.f32 %v1809, %v1949
        %v2012 = vadd.f32 %v1810, %v1952
        %v2013 = vadd.f32 %v1811, %v1957
        %v2014 = vadd.f32 %v1812, %v1960
        %v2015 = vadd.f32 %v1813, %v1965
        %v2016 = vadd.f32 %v1814, %v1968
        %v2017 = vadd.f32 %v1815, %v1973
        %v2018 = vadd.f32 %v1816, %v1976
        %v2019 = vadd.f32 %v1817, %v1981
        %v2020 = vadd.f32 %v1818, %v1984
        %v2021 = vadd.f32 %v1819, %v1989
        %v2022 = vadd.f32 %v1820, %v1992
        %v2023 = vadd.f32 %v1821, %v1997
        %v2024 = vadd.f32 %v1822, %v2000
        %v2025 = vadd.f32 %v1823, %v2005
        %v2026 = vadd.f32 %v1824, %v2008
        %v2027 = vld [vmem:[%s1828] sm:$0xf]
        %v2028 = vld [vmem:[%s1828 + $0x4] sm:$0xf]
        %v2029 = vld [vmem:[%s1828 + $0x8] sm:$0x1]
        %v2030 = vld [vmem:[%s1828 + $0xc] sm:$0xf]
        %v2031 = vld [vmem:[%s1828 + $0x10] sm:$0xf]
        %v2032 = vld [vmem:[%s1828 + $0x14] sm:$0x1]
        %v2033 = vld [vmem:[%s1828 + $0x18] sm:$0xf]
        %v2034 = vld [vmem:[%s1828 + $0x1c] sm:$0xf]
        %v2035 = vld [vmem:[%s1828 + $0x20] sm:$0x1]
        %v2036 = vld [vmem:[%s1828 + $0x24] sm:$0xf]
        %v2037 = vld [vmem:[%s1828 + $0x28] sm:$0xf]
        %v2038 = vld [vmem:[%s1828 + $0x2c] sm:$0x1]
        %v2039 = vld [vmem:[%s1828 + $0x30] sm:$0xf]
        %v2040 = vld [vmem:[%s1828 + $0x34] sm:$0xf]
        %v2041 = vld [vmem:[%s1828 + $0x38] sm:$0x1]
        %v2042 = vld [vmem:[%s1828 + $0x3c] sm:$0xf]
        %v2043 = vld [vmem:[%s1828 + $0x40] sm:$0xf]
        %v2044 = vld [vmem:[%s1828 + $0x44] sm:$0x1]
        %v2045 = vld [vmem:[%s1828 + $0x48] sm:$0xf]
        %v2046 = vld [vmem:[%s1828 + $0x4c] sm:$0xf]
        %v2047 = vld [vmem:[%s1828 + $0x50] sm:$0x1]
        %v2048 = vld [vmem:[%s1828 + $0x54] sm:$0xf]
        %v2049 = vld [vmem:[%s1828 + $0x58] sm:$0xf]
        %v2050 = vld [vmem:[%s1828 + $0x5c] sm:$0x1]
        %v2052 = vshrl.u32 %v2027, 16
        %v2054 = vrot.slane %v2052, 4
        %v2055 = vshll.u32 %v2027, 16
        %v2057 = vrot.slane %v2055, 5
        %v2058 = vor.u32 %v2054, %v2057
        %v2059 = vrot.slane %v2058, 4
        %v2061 = vshll.u32 %v2028, 16
        %v2063 = vrot.slane %v2061, 5
        %v2064 = vsel %vm229, %v2059, %v2063
        %v2065 = vshrl.u32 %v2028, 16
        %v2067 = vrot.slane %v2065, 4
        %v2068 = vor.u32 %v2067, %v2063
        %v2069 = vrot.slane %v2068, 4
        %v2071 = vshll.u32 %v2029, 16
        %v2073 = vrot.slane %v2071, 5
        %v2074 = vsel %vm229, %v2069, %v2073
        %v2076 = vshrl.u32 %v2030, 16
        %v2078 = vrot.slane %v2076, 4
        %v2079 = vshll.u32 %v2030, 16
        %v2081 = vrot.slane %v2079, 5
        %v2082 = vor.u32 %v2078, %v2081
        %v2083 = vrot.slane %v2082, 4
        %v2085 = vshll.u32 %v2031, 16
        %v2087 = vrot.slane %v2085, 5
        %v2088 = vsel %vm229, %v2083, %v2087
        %v2089 = vshrl.u32 %v2031, 16
        %v2091 = vrot.slane %v2089, 4
        %v2092 = vor.u32 %v2091, %v2087
        %v2093 = vrot.slane %v2092, 4
        %v2095 = vshll.u32 %v2032, 16
        %v2097 = vrot.slane %v2095, 5
        %v2098 = vsel %vm229, %v2093, %v2097
        %v2100 = vshrl.u32 %v2033, 16
        %v2102 = vrot.slane %v2100, 4
        %v2103 = vshll.u32 %v2033, 16
        %v2105 = vrot.slane %v2103, 5
        %v2106 = vor.u32 %v2102, %v2105
        %v2107 = vrot.slane %v2106, 4
        %v2109 = vshll.u32 %v2034, 16
        %v2111 = vrot.slane %v2109, 5
        %v2112 = vsel %vm229, %v2107, %v2111
        %v2113 = vshrl.u32 %v2034, 16
        %v2115 = vrot.slane %v2113, 4
        %v2116 = vor.u32 %v2115, %v2111
        %v2117 = vrot.slane %v2116, 4
        %v2119 = vshll.u32 %v2035, 16
        %v2121 = vrot.slane %v2119, 5
        %v2122 = vsel %vm229, %v2117, %v2121
        %v2124 = vshrl.u32 %v2036, 16
        %v2126 = vrot.slane %v2124, 4
        %v2127 = vshll.u32 %v2036, 16
        %v2129 = vrot.slane %v2127, 5
        %v2130 = vor.u32 %v2126, %v2129
        %v2131 = vrot.slane %v2130, 4
        %v2133 = vshll.u32 %v2037, 16
        %v2135 = vrot.slane %v2133, 5
        %v2136 = vsel %vm229, %v2131, %v2135
        %v2137 = vshrl.u32 %v2037, 16
        %v2139 = vrot.slane %v2137, 4
        %v2140 = vor.u32 %v2139, %v2135
        %v2141 = vrot.slane %v2140, 4
        %v2143 = vshll.u32 %v2038, 16
        %v2145 = vrot.slane %v2143, 5
        %v2146 = vsel %vm229, %v2141, %v2145
        %v2148 = vshrl.u32 %v2039, 16
        %v2150 = vrot.slane %v2148, 4
        %v2151 = vshll.u32 %v2039, 16
        %v2153 = vrot.slane %v2151, 5
        %v2154 = vor.u32 %v2150, %v2153
        %v2155 = vrot.slane %v2154, 4
        %v2157 = vshll.u32 %v2040, 16
        %v2159 = vrot.slane %v2157, 5
        %v2160 = vsel %vm229, %v2155, %v2159
        %v2161 = vshrl.u32 %v2040, 16
        %v2163 = vrot.slane %v2161, 4
        %v2164 = vor.u32 %v2163, %v2159
        %v2165 = vrot.slane %v2164, 4
        %v2167 = vshll.u32 %v2041, 16
        %v2169 = vrot.slane %v2167, 5
        %v2170 = vsel %vm229, %v2165, %v2169
        %v2172 = vshrl.u32 %v2042, 16
        %v2174 = vrot.slane %v2172, 4
        %v2175 = vshll.u32 %v2042, 16
        %v2177 = vrot.slane %v2175, 5
        %v2178 = vor.u32 %v2174, %v2177
        %v2179 = vrot.slane %v2178, 4
        %v2181 = vshll.u32 %v2043, 16
        %v2183 = vrot.slane %v2181, 5
        %v2184 = vsel %vm229, %v2179, %v2183
        %v2185 = vshrl.u32 %v2043, 16
        %v2187 = vrot.slane %v2185, 4
        %v2188 = vor.u32 %v2187, %v2183
        %v2189 = vrot.slane %v2188, 4
        %v2191 = vshll.u32 %v2044, 16
        %v2193 = vrot.slane %v2191, 5
        %v2194 = vsel %vm229, %v2189, %v2193
        %v2196 = vshrl.u32 %v2045, 16
        %v2198 = vrot.slane %v2196, 4
        %v2199 = vshll.u32 %v2045, 16
        %v2201 = vrot.slane %v2199, 5
        %v2202 = vor.u32 %v2198, %v2201
        %v2203 = vrot.slane %v2202, 4
        %v2205 = vshll.u32 %v2046, 16
        %v2207 = vrot.slane %v2205, 5
        %v2208 = vsel %vm229, %v2203, %v2207
        %v2209 = vshrl.u32 %v2046, 16
        %v2211 = vrot.slane %v2209, 4
        %v2212 = vor.u32 %v2211, %v2207
        %v2213 = vrot.slane %v2212, 4
        %v2215 = vshll.u32 %v2047, 16
        %v2217 = vrot.slane %v2215, 5
        %v2218 = vsel %vm229, %v2213, %v2217
        %v2220 = vshrl.u32 %v2048, 16
        %v2222 = vrot.slane %v2220, 4
        %v2223 = vshll.u32 %v2048, 16
        %v2225 = vrot.slane %v2223, 5
        %v2226 = vor.u32 %v2222, %v2225
        %v2227 = vrot.slane %v2226, 4
        %v2229 = vshll.u32 %v2049, 16
        %v2231 = vrot.slane %v2229, 5
        %v2232 = vsel %vm229, %v2227, %v2231
        %v2233 = vshrl.u32 %v2049, 16
        %v2235 = vrot.slane %v2233, 4
        %v2236 = vor.u32 %v2235, %v2231
        %v2237 = vrot.slane %v2236, 4
        %v2239 = vshll.u32 %v2050, 16
        %v2241 = vrot.slane %v2239, 5
        %v2242 = vsel %vm229, %v2237, %v2241
        %s2243 = scalar_lea.vmem %s1, 14
        %v2244 = vld [vmem:[%s2243] sm:$0x3]
        %v2245 = vunpack.c.l.b16 %v2064
        %v2246 = vunpack.c.l.b16 %v2074
        %v2247 = vunpack.c.l.b16 %v2088
        %v2248 = vunpack.c.l.b16 %v2098
        %v2249 = vunpack.c.l.b16 %v2112
        %v2250 = vunpack.c.l.b16 %v2122
        %v2251 = vunpack.c.l.b16 %v2136
        %v2252 = vunpack.c.l.b16 %v2146
        %v2253 = vunpack.c.l.b16 %v2160
        %v2254 = vunpack.c.l.b16 %v2170
        %v2255 = vunpack.c.l.b16 %v2184
        %v2256 = vunpack.c.l.b16 %v2194
        %v2257 = vunpack.c.l.b16 %v2208
        %v2258 = vunpack.c.l.b16 %v2218
        %v2259 = vunpack.c.l.b16 %v2232
        %v2260 = vunpack.c.l.b16 %v2242
        %v2261 = vpack.c.b16 %v2246, %v2245
        %v2262 = vpack.c.b16 %v2248, %v2247
        %v2263 = vpack.c.b16 %v2250, %v2249
        %v2264 = vpack.c.b16 %v2252, %v2251
        %v2265 = vpack.c.b16 %v2254, %v2253
        %v2266 = vpack.c.b16 %v2256, %v2255
        %v2267 = vpack.c.b16 %v2258, %v2257
        %v2268 = vpack.c.b16 %v2260, %v2259
        %v2270 = vsel %vm448, %v2261, 0
        %v2273 = vsel %vm448, %v2262, 0
        %v2276 = vsel %vm448, %v2263, 0
        %v2279 = vsel %vm448, %v2264, 0
        %v2282 = vsel %vm448, %v2265, 0
        %v2285 = vsel %vm448, %v2266, 0
        %v2288 = vsel %vm448, %v2267, 0
        %v2291 = vsel %vm448, %v2268, 0
        %v2294 = vsel %vm473, %v2244, 0
        %2296 = vmatprep.subr.bf16.mxu0 0
        %2297 = vmatpush1.bf16.msra.mxu0 %v2294
        %2298 = vmatprep.subr.bf16.mxu0 0
        %2299 = vmatpush1.bf16.msra.mxu0 0
        %2300 = vmatprep.subr.bf16.mxu0 0
        %2301 = vmatpush1.bf16.msra.mxu0 0
        %2302 = vmatprep.subr.bf16.mxu0 0
        %2303 = vmatpush1.bf16.msra.mxu0 0
        %2304 = vmatprep.subr.bf16.mxu0 0
        %2305 = vmatpush1.bf16.msra.mxu0 0
        %2306 = vmatprep.subr.bf16.mxu0 0
        %2307 = vmatpush1.bf16.msra.mxu0 0
        %2308 = vmatprep.subr.bf16.mxu0 0
        %2309 = vmatpush1.bf16.msra.mxu0 0
        %2310 = vmatprep.subr.bf16.mxu0 0
        %2311 = vmatpush1.bf16.msra.mxu0 0
        %2312 = vmatprep.subr.bf16.mxu0 0
        %2313 = vmatpush1.bf16.msra.mxu0 0
        %2314 = vmatprep.subr.bf16.mxu0 0
        %2315 = vmatpush1.bf16.msra.mxu0 0
        %2316 = vmatprep.subr.bf16.mxu0 0
        %2317 = vmatpush1.bf16.msra.mxu0 0
        %2318 = vmatprep.subr.bf16.mxu0 0
        %2319 = vmatpush1.bf16.msra.mxu0 0
        %2320 = vmatprep.subr.bf16.mxu0 0
        %2321 = vmatpush1.bf16.msra.mxu0 0
        %2322 = vmatprep.subr.bf16.mxu0 0
        %2323 = vmatpush1.bf16.msra.mxu0 0
        %2324 = vmatprep.subr.bf16.mxu0 0
        %2325 = vmatpush1.bf16.msra.mxu0 0
        %2326 = vmatprep.subr.bf16.mxu0 0
        %2327 = vmatpush1.bf16.msra.mxu0 0
        %2328 = vmatprep.mubr.bf16.mxu0 0
        %2329 = vmatmul.mubr.bf16.gmra.mrb[0].mxu0 %v2270
        %v2330 = vpop.f32.mrb[0].mxu0
        %v2331 = vadd.f32 0.0, %v2330
        %v2332 = vpop.f32.mrb[0].mxu0
        %v2333 = vpop.f32.mrb[0].mxu0
        %v2334 = vadd.f32 0.0, %v2333
        %v2335 = vpop.f32.mrb[0].mxu0
        %2336 = vmatprep.mubr.bf16.mxu0 0
        %2337 = vmatmul.mubr.bf16.gmra.mrb[0].mxu0 %v2273
        %v2338 = vpop.f32.mrb[0].mxu0
        %v2339 = vadd.f32 0.0, %v2338
        %v2340 = vpop.f32.mrb[0].mxu0
        %v2341 = vpop.f32.mrb[0].mxu0
        %v2342 = vadd.f32 0.0, %v2341
        %v2343 = vpop.f32.mrb[0].mxu0
        %2344 = vmatprep.mubr.bf16.mxu0 0
        %2345 = vmatmul.mubr.bf16.gmra.mrb[0].mxu0 %v2276
        %v2346 = vpop.f32.mrb[0].mxu0
        %v2347 = vadd.f32 0.0, %v2346
        %v2348 = vpop.f32.mrb[0].mxu0
        %v2349 = vpop.f32.mrb[0].mxu0
        %v2350 = vadd.f32 0.0, %v2349
        %v2351 = vpop.f32.mrb[0].mxu0
        %2352 = vmatprep.mubr.bf16.mxu0 0
        %2353 = vmatmul.mubr.bf16.gmra.mrb[0].mxu0 %v2279
        %v2354 = vpop.f32.mrb[0].mxu0
        %v2355 = vadd.f32 0.0, %v2354
        %v2356 = vpop.f32.mrb[0].mxu0
        %v2357 = vpop.f32.mrb[0].mxu0
        %v2358 = vadd.f32 0.0, %v2357
        %v2359 = vpop.f32.mrb[0].mxu0
        %2360 = vmatprep.mubr.bf16.mxu0 0
        %2361 = vmatmul.mubr.bf16.gmra.mrb[0].mxu0 %v2282
        %v2362 = vpop.f32.mrb[0].mxu0
        %v2363 = vadd.f32 0.0, %v2362
        %v2364 = vpop.f32.mrb[0].mxu0
        %v2365 = vpop.f32.mrb[0].mxu0
        %v2366 = vadd.f32 0.0, %v2365
        %v2367 = vpop.f32.mrb[0].mxu0
        %2368 = vmatprep.mubr.bf16.mxu0 0
        %2369 = vmatmul.mubr.bf16.gmra.mrb[0].mxu0 %v2285
        %v2370 = vpop.f32.mrb[0].mxu0
        %v2371 = vadd.f32 0.0, %v2370
        %v2372 = vpop.f32.mrb[0].mxu0
        %v2373 = vpop.f32.mrb[0].mxu0
        %v2374 = vadd.f32 0.0, %v2373
        %v2375 = vpop.f32.mrb[0].mxu0
        %2376 = vmatprep.mubr.bf16.mxu0 0
        %2377 = vmatmul.mubr.bf16.gmra.mrb[0].mxu0 %v2288
        %v2378 = vpop.f32.mrb[0].mxu0
        %v2379 = vadd.f32 0.0, %v2378
        %v2380 = vpop.f32.mrb[0].mxu0
        %v2381 = vpop.f32.mrb[0].mxu0
        %v2382 = vadd.f32 0.0, %v2381
        %v2383 = vpop.f32.mrb[0].mxu0
        %2384 = vmatprep.mubr.bf16.mxu0 0
        %2385 = vmatmul.mubr.bf16.gmra.mrb[0].mxu0 %v2291
        %v2386 = vpop.f32.mrb[0].mxu0
        %v2387 = vadd.f32 0.0, %v2386
        %v2388 = vpop.f32.mrb[0].mxu0
        %v2389 = vpop.f32.mrb[0].mxu0
        %v2390 = vadd.f32 0.0, %v2389
        %v2391 = vpop.f32.mrb[0].mxu0
        %2392 = vdwg.mxu0
        %v2393 = vadd.f32 %v2011, %v2331
        %v2394 = vadd.f32 %v2012, %v2334
        %v2395 = vadd.f32 %v2013, %v2339
        %v2396 = vadd.f32 %v2014, %v2342
        %v2397 = vadd.f32 %v2015, %v2347
        %v2398 = vadd.f32 %v2016, %v2350
        %v2399 = vadd.f32 %v2017, %v2355
        %v2400 = vadd.f32 %v2018, %v2358
        %v2401 = vadd.f32 %v2019, %v2363
        %v2402 = vadd.f32 %v2020, %v2366
        %v2403 = vadd.f32 %v2021, %v2371
        %v2404 = vadd.f32 %v2022, %v2374
        %v2405 = vadd.f32 %v2023, %v2379
        %v2406 = vadd.f32 %v2024, %v2382
        %v2407 = vadd.f32 %v2025, %v2387
        %v2408 = vadd.f32 %v2026, %v2390
        %v2409 = vld [vmem:[%s1828] sm:$0xe]
        %v2410 = vld [vmem:[%s1828 + $0xc] sm:$0xe]
        %v2411 = vld [vmem:[%s1828 + $0x18] sm:$0xe]
        %v2412 = vld [vmem:[%s1828 + $0x24] sm:$0xe]
        %v2413 = vld [vmem:[%s1828 + $0x30] sm:$0xe]
        %v2414 = vld [vmem:[%s1828 + $0x3c] sm:$0xe]
        %v2415 = vld [vmem:[%s1828 + $0x48] sm:$0xe]
        %v2416 = vld [vmem:[%s1828 + $0x54] sm:$0xe]
        %v2441 = vrot.slane %v2409, 5
        %v2442 = vrot.slane %v2441, 4
        %v2443 = vrot.slane %v2028, 5
        %v2444 = vsel %vm764, %v2442, %v2443
        %v2445 = vrot.slane %v2443, 4
        %v2446 = vrot.slane %v2029, 5
        %v2447 = vsel %vm764, %v2445, %v2446
        %v2448 = vrot.slane %v2410, 5
        %v2449 = vrot.slane %v2448, 4
        %v2450 = vrot.slane %v2031, 5
        %v2451 = vsel %vm764, %v2449, %v2450
        %v2452 = vrot.slane %v2450, 4
        %v2453 = vrot.slane %v2032, 5
        %v2454 = vsel %vm764, %v2452, %v2453
        %v2455 = vrot.slane %v2411, 5
        %v2456 = vrot.slane %v2455, 4
        %v2457 = vrot.slane %v2034, 5
        %v2458 = vsel %vm764, %v2456, %v2457
        %v2459 = vrot.slane %v2457, 4
        %v2460 = vrot.slane %v2035, 5
        %v2461 = vsel %vm764, %v2459, %v2460
        %v2462 = vrot.slane %v2412, 5
        %v2463 = vrot.slane %v2462, 4
        %v2464 = vrot.slane %v2037, 5
        %v2465 = vsel %vm764, %v2463, %v2464
        %v2466 = vrot.slane %v2464, 4
        %v2467 = vrot.slane %v2038, 5
        %v2468 = vsel %vm764, %v2466, %v2467
        %v2469 = vrot.slane %v2413, 5
        %v2470 = vrot.slane %v2469, 4
        %v2471 = vrot.slane %v2040, 5
        %v2472 = vsel %vm764, %v2470, %v2471
        %v2473 = vrot.slane %v2471, 4
        %v2474 = vrot.slane %v2041, 5
        %v2475 = vsel %vm764, %v2473, %v2474
        %v2476 = vrot.slane %v2414, 5
        %v2477 = vrot.slane %v2476, 4
        %v2478 = vrot.slane %v2043, 5
        %v2479 = vsel %vm764, %v2477, %v2478
        %v2480 = vrot.slane %v2478, 4
        %v2481 = vrot.slane %v2044, 5
        %v2482 = vsel %vm764, %v2480, %v2481
        %v2483 = vrot.slane %v2415, 5
        %v2484 = vrot.slane %v2483, 4
        %v2485 = vrot.slane %v2046, 5
        %v2486 = vsel %vm764, %v2484, %v2485
        %v2487 = vrot.slane %v2485, 4
        %v2488 = vrot.slane %v2047, 5
        %v2489 = vsel %vm764, %v2487, %v2488
        %v2490 = vrot.slane %v2416, 5
        %v2491 = vrot.slane %v2490, 4
        %v2492 = vrot.slane %v2049, 5
        %v2493 = vsel %vm764, %v2491, %v2492
        %v2494 = vrot.slane %v2492, 4
        %v2495 = vrot.slane %v2050, 5
        %v2496 = vsel %vm764, %v2494, %v2495
        %s2497 = scalar_lea.vmem %s1, 16
        %v2498 = vld [vmem:[%s2497] sm:$0x3]
        %v2499 = vunpack.c.l.b16 %v2444
        %v2500 = vunpack.c.l.b16 %v2447
        %v2501 = vunpack.c.l.b16 %v2451
        %v2502 = vunpack.c.l.b16 %v2454
        %v2503 = vunpack.c.l.b16 %v2458
        %v2504 = vunpack.c.l.b16 %v2461
        %v2505 = vunpack.c.l.b16 %v2465
        %v2506 = vunpack.c.l.b16 %v2468
        %v2507 = vunpack.c.l.b16 %v2472
        %v2508 = vunpack.c.l.b16 %v2475
        %v2509 = vunpack.c.l.b16 %v2479
        %v2510 = vunpack.c.l.b16 %v2482
        %v2511 = vunpack.c.l.b16 %v2486
        %v2512 = vunpack.c.l.b16 %v2489
        %v2513 = vunpack.c.l.b16 %v2493
        %v2514 = vunpack.c.l.b16 %v2496
        %v2515 = vpack.c.b16 %v2500, %v2499
        %v2516 = vpack.c.b16 %v2502, %v2501
        %v2517 = vpack.c.b16 %v2504, %v2503
        %v2518 = vpack.c.b16 %v2506, %v2505
        %v2519 = vpack.c.b16 %v2508, %v2507
        %v2520 = vpack.c.b16 %v2510, %v2509
        %v2521 = vpack.c.b16 %v2512, %v2511
        %v2522 = vpack.c.b16 %v2514, %v2513
        %v2524 = vsel %vm448, %v2515, 0
        %v2527 = vsel %vm448, %v2516, 0
        %v2530 = vsel %vm448, %v2517, 0
        %v2533 = vsel %vm448, %v2518, 0
        %v2536 = vsel %vm448, %v2519, 0
        %v2539 = vsel %vm448, %v2520, 0
        %v2542 = vsel %vm448, %v2521, 0
        %v2545 = vsel %vm448, %v2522, 0
        %v2548 = vsel %vm473, %v2498, 0
        %2550 = vmatprep.subr.bf16.mxu0 0
        %2551 = vmatpush1.bf16.msra.mxu0 %v2548
        %2552 = vmatprep.subr.bf16.mxu0 0
        %2553 = vmatpush1.bf16.msra.mxu0 0
        %2554 = vmatprep.subr.bf16.mxu0 0
        %2555 = vmatpush1.bf16.msra.mxu0 0
        %2556 = vmatprep.subr.bf16.mxu0 0
        %2557 = vmatpush1.bf16.msra.mxu0 0
        %2558 = vmatprep.subr.bf16.mxu0 0
        %2559 = vmatpush1.bf16.msra.mxu0 0
        %2560 = vmatprep.subr.bf16.mxu0 0
        %2561 = vmatpush1.bf16.msra.mxu0 0
        %2562 = vmatprep.subr.bf16.mxu0 0
        %2563 = vmatpush1.bf16.msra.mxu0 0
        %2564 = vmatprep.subr.bf16.mxu0 0
        %2565 = vmatpush1.bf16.msra.mxu0 0
        %2566 = vmatprep.subr.bf16.mxu0 0
        %2567 = vmatpush1.bf16.msra.mxu0 0
        %2568 = vmatprep.subr.bf16.mxu0 0
        %2569 = vmatpush1.bf16.msra.mxu0 0
        %2570 = vmatprep.subr.bf16.mxu0 0
        %2571 = vmatpush1.bf16.msra.mxu0 0
        %2572 = vmatprep.subr.bf16.mxu0 0
        %2573 = vmatpush1.bf16.msra.mxu0 0
        %2574 = vmatprep.subr.bf16.mxu0 0
        %2575 = vmatpush1.bf16.msra.mxu0 0
        %2576 = vmatprep.subr.bf16.mxu0 0
        %2577 = vmatpush1.bf16.msra.mxu0 0
        %2578 = vmatprep.subr.bf16.mxu0 0
        %2579 = vmatpush1.bf16.msra.mxu0 0
        %2580 = vmatprep.subr.bf16.mxu0 0
        %2581 = vmatpush1.bf16.msra.mxu0 0
        %2582 = vmatprep.mubr.bf16.mxu0 0
        %2583 = vmatmul.mubr.bf16.gmra.mrb[0].mxu0 %v2524
        %v2584 = vpop.f32.mrb[0].mxu0
        %v2585 = vadd.f32 0.0, %v2584
        %v2586 = vpop.f32.mrb[0].mxu0
        %v2587 = vpop.f32.mrb[0].mxu0
        %v2588 = vadd.f32 0.0, %v2587
        %v2589 = vpop.f32.mrb[0].mxu0
        %2590 = vmatprep.mubr.bf16.mxu0 0
        %2591 = vmatmul.mubr.bf16.gmra.mrb[0].mxu0 %v2527
        %v2592 = vpop.f32.mrb[0].mxu0
        %v2593 = vadd.f32 0.0, %v2592
        %v2594 = vpop.f32.mrb[0].mxu0
        %v2595 = vpop.f32.mrb[0].mxu0
        %v2596 = vadd.f32 0.0, %v2595
        %v2597 = vpop.f32.mrb[0].mxu0
        %2598 = vmatprep.mubr.bf16.mxu0 0
        %2599 = vmatmul.mubr.bf16.gmra.mrb[0].mxu0 %v2530
        %v2600 = vpop.f32.mrb[0].mxu0
        %v2601 = vadd.f32 0.0, %v2600
        %v2602 = vpop.f32.mrb[0].mxu0
        %v2603 = vpop.f32.mrb[0].mxu0
        %v2604 = vadd.f32 0.0, %v2603
        %v2605 = vpop.f32.mrb[0].mxu0
        %2606 = vmatprep.mubr.bf16.mxu0 0
        %2607 = vmatmul.mubr.bf16.gmra.mrb[0].mxu0 %v2533
        %v2608 = vpop.f32.mrb[0].mxu0
        %v2609 = vadd.f32 0.0, %v2608
        %v2610 = vpop.f32.mrb[0].mxu0
        %v2611 = vpop.f32.mrb[0].mxu0
        %v2612 = vadd.f32 0.0, %v2611
        %v2613 = vpop.f32.mrb[0].mxu0
        %2614 = vmatprep.mubr.bf16.mxu0 0
        %2615 = vmatmul.mubr.bf16.gmra.mrb[0].mxu0 %v2536
        %v2616 = vpop.f32.mrb[0].mxu0
        %v2617 = vadd.f32 0.0, %v2616
        %v2618 = vpop.f32.mrb[0].mxu0
        %v2619 = vpop.f32.mrb[0].mxu0
        %v2620 = vadd.f32 0.0, %v2619
        %v2621 = vpop.f32.mrb[0].mxu0
        %2622 = vmatprep.mubr.bf16.mxu0 0
        %2623 = vmatmul.mubr.bf16.gmra.mrb[0].mxu0 %v2539
        %v2624 = vpop.f32.mrb[0].mxu0
        %v2625 = vadd.f32 0.0, %v2624
        %v2626 = vpop.f32.mrb[0].mxu0
        %v2627 = vpop.f32.mrb[0].mxu0
        %v2628 = vadd.f32 0.0, %v2627
        %v2629 = vpop.f32.mrb[0].mxu0
        %2630 = vmatprep.mubr.bf16.mxu0 0
        %2631 = vmatmul.mubr.bf16.gmra.mrb[0].mxu0 %v2542
        %v2632 = vpop.f32.mrb[0].mxu0
        %v2633 = vadd.f32 0.0, %v2632
        %v2634 = vpop.f32.mrb[0].mxu0
        %v2635 = vpop.f32.mrb[0].mxu0
        %v2636 = vadd.f32 0.0, %v2635
        %v2637 = vpop.f32.mrb[0].mxu0
        %2638 = vmatprep.mubr.bf16.mxu0 0
        %2639 = vmatmul.mubr.bf16.gmra.mrb[0].mxu0 %v2545
        %v2640 = vpop.f32.mrb[0].mxu0
        %v2641 = vadd.f32 0.0, %v2640
        %v2642 = vpop.f32.mrb[0].mxu0
        %v2643 = vpop.f32.mrb[0].mxu0
        %v2644 = vadd.f32 0.0, %v2643
        %v2645 = vpop.f32.mrb[0].mxu0
        %2646 = vdwg.mxu0
        %v2647 = vadd.f32 %v2393, %v2585
        %v2648 = vadd.f32 %v2394, %v2588
        %v2649 = vadd.f32 %v2395, %v2593
        %v2650 = vadd.f32 %v2396, %v2596
        %v2651 = vadd.f32 %v2397, %v2601
        %v2652 = vadd.f32 %v2398, %v2604
        %v2653 = vadd.f32 %v2399, %v2609
        %v2654 = vadd.f32 %v2400, %v2612
        %v2655 = vadd.f32 %v2401, %v2617
        %v2656 = vadd.f32 %v2402, %v2620
        %v2657 = vadd.f32 %v2403, %v2625
        %v2658 = vadd.f32 %v2404, %v2628
        %v2659 = vadd.f32 %v2405, %v2633
        %v2660 = vadd.f32 %v2406, %v2636
        %v2661 = vadd.f32 %v2407, %v2641
        %v2662 = vadd.f32 %v2408, %v2644
        %v2663 = vpack.c.bf16 %v2648, %v2647
        %v2664 = vpack.c.bf16 %v2650, %v2649
        %v2665 = vpack.c.bf16 %v2652, %v2651
        %v2666 = vpack.c.bf16 %v2654, %v2653
        %v2667 = vpack.c.bf16 %v2656, %v2655
        %v2668 = vpack.c.bf16 %v2658, %v2657
        %v2669 = vpack.c.bf16 %v2660, %v2659
        %v2670 = vpack.c.bf16 %v2662, %v2661
        %v2679 = vunpack.c.l.b16 %v2663
        %v2680 = vunpack.c.h.b16 %v2663
        %v2681 = vunpack.c.l.b16 %v2664
        %v2682 = vunpack.c.h.b16 %v2664
        %v2683 = vunpack.c.l.b16 %v2665
        %v2684 = vunpack.c.h.b16 %v2665
        %v2685 = vunpack.c.l.b16 %v2666
        %v2686 = vunpack.c.h.b16 %v2666
        %v2687 = vunpack.c.l.b16 %v2667
        %v2688 = vunpack.c.h.b16 %v2667
        %v2689 = vunpack.c.l.b16 %v2668
        %v2690 = vunpack.c.h.b16 %v2668
        %v2691 = vunpack.c.l.b16 %v2669
        %v2692 = vunpack.c.h.b16 %v2669
        %v2693 = vunpack.c.l.b16 %v2670
        %v2694 = vunpack.c.h.b16 %v2670
        %v2695 = vpack.c.b16 %v2679, %v2679
        %v2696 = vpack.c.b16 %v2680, %v2680
        %v2697 = vpack.c.b16 %v2681, %v2681
        %v2698 = vpack.c.b16 %v2682, %v2682
        %v2699 = vpack.c.b16 %v2683, %v2683
        %v2700 = vpack.c.b16 %v2684, %v2684
        %v2701 = vpack.c.b16 %v2685, %v2685
        %v2702 = vpack.c.b16 %v2686, %v2686
        %v2703 = vpack.c.b16 %v2687, %v2687
        %v2704 = vpack.c.b16 %v2688, %v2688
        %v2705 = vpack.c.b16 %v2689, %v2689
        %v2706 = vpack.c.b16 %v2690, %v2690
        %v2707 = vpack.c.b16 %v2691, %v2691
        %v2708 = vpack.c.b16 %v2692, %v2692
        %v2709 = vpack.c.b16 %v2693, %v2693
        %v2710 = vpack.c.b16 %v2694, %v2694
        %2727 = vst [vmem:[%s183] sm:$0xf] %v2695
        %2728 = vst [vmem:[%s183 + $0x4] sm:$0xf] %v2696
        %2729 = vst [vmem:[%s183 + $0x8] sm:$0xf] %v2697
        %2730 = vst [vmem:[%s183 + $0xc] sm:$0xf] %v2698
        %2731 = vst [vmem:[%s183 + $0x10] sm:$0xf] %v2699
        %2732 = vst [vmem:[%s183 + $0x14] sm:$0xf] %v2700
        %2733 = vst [vmem:[%s183 + $0x18] sm:$0xf] %v2701
        %2734 = vst [vmem:[%s183 + $0x1c] sm:$0xf] %v2702
        %2735 = vst [vmem:[%s183 + $0x20] sm:$0xf] %v2703
        %2736 = vst [vmem:[%s183 + $0x24] sm:$0xf] %v2704
        %2737 = vst [vmem:[%s183 + $0x28] sm:$0xf] %v2705
        %2738 = vst [vmem:[%s183 + $0x2c] sm:$0xf] %v2706
        %2739 = vst [vmem:[%s183 + $0x30] sm:$0xf] %v2707
        %2740 = vst [vmem:[%s183 + $0x34] sm:$0xf] %v2708
        %2741 = vst [vmem:[%s183 + $0x38] sm:$0xf] %v2709
        %2742 = vst [vmem:[%s183 + $0x3c] sm:$0xf] %v2710
        %v2743 = vadd.f32 %v2647, %v2648
        %v2744 = vadd.f32 %v2743, %v2649
        %v2745 = vadd.f32 %v2744, %v2650
        %v2746 = vadd.f32 %v2745, %v2651
        %v2747 = vadd.f32 %v2746, %v2652
        %v2748 = vadd.f32 %v2747, %v2653
        %v2749 = vadd.f32 %v2748, %v2654
        %v2750 = vadd.f32 %v2749, %v2655
        %v2751 = vadd.f32 %v2750, %v2656
        %v2752 = vadd.f32 %v2751, %v2657
        %v2753 = vadd.f32 %v2752, %v2658
        %v2754 = vadd.f32 %v2753, %v2659
        %v2755 = vadd.f32 %v2754, %v2660
        %v2756 = vadd.f32 %v2755, %v2661
        %v2757 = vadd.f32 %v2756, %v2662
        %v2758 = vrot.slane %v2757, 4
        %v2759 = vadd.f32 %v2757, %v2758
        %v2760 = vrot.slane %v2759, 2
        %v2761 = vadd.f32 %v2759, %v2760
        %v2762 = vrot.slane %v2761, 1
        %v2763 = vadd.f32 %v2761, %v2762
        %v2764 = vmul.f32 %v2647, %v2647
        %v2765 = vmul.f32 %v2648, %v2648
        %v2766 = vmul.f32 %v2649, %v2649
        %v2767 = vmul.f32 %v2650, %v2650
        %v2768 = vmul.f32 %v2651, %v2651
        %v2769 = vmul.f32 %v2652, %v2652
        %v2770 = vmul.f32 %v2653, %v2653
        %v2771 = vmul.f32 %v2654, %v2654
        %v2772 = vmul.f32 %v2655, %v2655
        %v2773 = vmul.f32 %v2656, %v2656
        %v2774 = vmul.f32 %v2657, %v2657
        %v2775 = vmul.f32 %v2658, %v2658
        %v2776 = vmul.f32 %v2659, %v2659
        %v2777 = vmul.f32 %v2660, %v2660
        %v2778 = vmul.f32 %v2661, %v2661
        %v2779 = vmul.f32 %v2662, %v2662
        %v2780 = vadd.f32 %v2764, %v2765
        %v2781 = vadd.f32 %v2780, %v2766
        %v2782 = vadd.f32 %v2781, %v2767
        %v2783 = vadd.f32 %v2782, %v2768
        %v2784 = vadd.f32 %v2783, %v2769
        %v2785 = vadd.f32 %v2784, %v2770
        %v2786 = vadd.f32 %v2785, %v2771
        %v2787 = vadd.f32 %v2786, %v2772
        %v2788 = vadd.f32 %v2787, %v2773
        %v2789 = vadd.f32 %v2788, %v2774
        %v2790 = vadd.f32 %v2789, %v2775
        %v2791 = vadd.f32 %v2790, %v2776
        %v2792 = vadd.f32 %v2791, %v2777
        %v2793 = vadd.f32 %v2792, %v2778
        %v2794 = vadd.f32 %v2793, %v2779
        %v2795 = vrot.slane %v2794, 4
        %v2796 = vadd.f32 %v2794, %v2795
        %v2797 = vrot.slane %v2796, 2
        %v2798 = vadd.f32 %v2796, %v2797
        %v2799 = vrot.slane %v2798, 1
        %v2800 = vadd.f32 %v2798, %v2799
        %vm2801 = vcmask 1040384
        %v2802 = vsel %vm2801, %v2763, %v2800
        %2803 = vst [vmem:[%s190] sm:$0x3] %v2802
        %s2804 = sand.u32 %s90, 1
        %s2805 = scalar_lea.sflag [#allocation3], %s2804
        %s2806 = sand.u32 %s90, 1
        %s2807 = smul.addr %s2806, 64
        %s2808 = scalar_lea.vmem [#allocation2], %s2807
        %s2809 = sand.u32 %s118, 1
        %s2810 = scalar_lea.sflag [#allocation5], %s2809
        %s2811 = sand.u32 %s118, 1
        %s2812 = smul.addr %s2811, 2
        %s2813 = scalar_lea.vmem [#allocation4], %s2812
        // Predicated region
        $region29: #{tpu_custom_call.1} parent=27 // pred_check
          %p2814 = pneg %p100
        $region30: #{tpu_custom_call.1} parent=27 // pred_check_branch
          %2816 = sbr.rel (%p2814) target = $region32
        $region31: #{tpu_custom_call.1} parent=27 // pred_region
          %s2817 = smul.u32 16, %s26
          %s2819 = ssub.s32 1024, 1024
          %2820 = vsyncadd %s2805, %s2819
          %s2821 = smul.addr %s25, 32
          %s2822 = sadd.s32 %s2817, %s2821
          %s2823 = smul.addr %s2822, 64
          %s2824 = scalar_lea.hbm %s2, %s2823
          %s2825 = sshll.u32 %s2808, 4
          %s2826 = int_to_ptr.vmem [resolvable:$true] %s2825
          %2831 = dma.vmem_to_hbm [thread:$0]  %s2826, 1024, %s2824, %s2805, 64, 64, 4
        $region32: #{tpu_custom_call.1} parent=27 // pred_fallthru
          _
        // Predicated region
        $region33: #{tpu_custom_call.1} parent=27 // pred_check
          %p2832 = pneg %p128
        $region34: #{tpu_custom_call.1} parent=27 // pred_check_branch
          %2834 = sbr.rel (%p2832) target = $region36
        $region35: #{tpu_custom_call.1} parent=27 // pred_region
          %s2836 = ssub.s32 32, 32
          %2837 = vsyncadd %s2810, %s2836
          %s2838 = smul.addr %s25, 2
          %s2839 = sadd.s32 %s26, %s2838
          %s2840 = smul.addr %s2839, 32
          %s2841 = scalar_lea.hbm %s3, %s2840
          %s2843 = sshll.u32 %s2813, 4
          %s2844 = int_to_ptr.vmem [resolvable:$true] %s2843
          %2846 = dma.vmem_to_hbm [thread:$0]  %s2844, 32, %s2841, %s2810
        $region36: #{tpu_custom_call.1} parent=27 // pred_fallthru
          _
      $region28: #{tpu_custom_call.1} parent=5 // pred_fallthru
        _
      %p2847 = scmp.le.s32.totalorder 2, %s16
      // Predicated region
      $region37: #{tpu_custom_call.1} parent=5 // pred_check
        %p2848 = pneg %p2847
      $region38: #{tpu_custom_call.1} parent=5 // pred_check_branch
        %2850 = sbr.rel (%p2848) target = $region40
      $region39: #{tpu_custom_call.1} parent=5 // pred_region
        %s2851 = ssub.s32 %s16, 2
        // Predicated region
        $region41: #{tpu_custom_call.1} parent=39 // pred_check
          %p2852 = pneg %p106
        $region42: #{tpu_custom_call.1} parent=39 // pred_check_branch
          %2854 = sbr.rel (%p2852) target = $region44
        $region43: #{tpu_custom_call.1} parent=39 // pred_region
          %s2855 = sand.u32 %s91, 1
          %s2856 = scalar_lea.sflag [#allocation3], %s2855
          %s2857 = sand.u32 %s91, 1
          %s2858 = smul.addr %s2857, 64
          %s2859 = scalar_lea.vmem [#allocation2], %s2858
          %2860 = dma.done %s2856, 1024
        $region44: #{tpu_custom_call.1} parent=39 // pred_fallthru
          _
        // Predicated region
        $region45: #{tpu_custom_call.1} parent=39 // pred_check
          %p2861 = pneg %p134
        $region46: #{tpu_custom_call.1} parent=39 // pred_check_branch
          %2863 = sbr.rel (%p2861) target = $region48
        $region47: #{tpu_custom_call.1} parent=39 // pred_region
          %s2864 = sand.u32 %s119, 1
          %s2865 = scalar_lea.sflag [#allocation5], %s2864
          %s2866 = sand.u32 %s119, 1
          %s2867 = smul.addr %s2866, 2
          %s2868 = scalar_lea.vmem [#allocation4], %s2867
          %2869 = dma.done %s2865, 32
        $region48: #{tpu_custom_call.1} parent=39 // pred_fallthru
          _
      $region40: #{tpu_custom_call.1} parent=5 // pred_fallthru
        _
    $region6: #{tpu_custom_call.1} parent=1 // loop_footer
      %s20 = sadd.s32 1, %s16
    $region7: #{tpu_custom_call.1} parent=1 // loop_footer_branch
      %15 = sbr.rel target = $region3
    $region8: #{tpu_custom_call.1} parent=1 // loop_exit
      _
    %2870 = vsyncpa [#allocation3], 1
    %s2871 = scalar_lea.sflag [#allocation3], 1
    %2872 = vsyncpa %s2871, 1
    %2873 = vsyncpa [#allocation5], 1
    %s2874 = scalar_lea.sflag [#allocation5], 1
    %2875 = vsyncpa %s2874, 1

</llo_original>
